<compile_context>
chip_gen: v7x
topology: tpu7x:2x2x1
jax: 0.10.0
libtpu: 0.0.40
codegen_flags: <defaults>
</compile_context>

<pallas_src>
import math

import jax
import jax.numpy as jnp
from jax.experimental import pallas as pl
from jax.experimental.pallas import tpu as pltpu

LN_EPS = 1e-5  # torch.nn.LayerNorm default


def _fused_patch_expand_kernel(x_ref, w_ref, b_ref, o_ref):
    """LayerNorm + expansion matmul + pixel shuffle for a block of h-rows.

    x_ref: (T2, 2C)        packed token pairs: lanes [0:C) = even-w token,
                           lanes [C:2C) = odd-w token of the pair.
    w_ref: (2C, 2E) bf16   LN-affine folded in, block structure + column
                           permutation route every output channel directly to
                           its final (pixel-shuffled) lane.
    b_ref: (1, 2E) f32     folded LayerNorm bias (beta @ W), same lane order.
    o_ref: (R, 2, W2, E)   [h-row, output-row parity s, w-pair, 4*dim_out].
    """
    C = x_ref.shape[1] // 2
    R, _, W2, E = o_ref.shape

    x = x_ref[...].astype(jnp.float32)
    xe = x[:, :C]                      # even-w token of each pair
    xo = x[:, C:]                      # odd-w token

    # Two-pass LayerNorm statistics in f32 (per token).  On a partial tail
    # block the padded rows hold garbage; var >= 0 and +eps keep rsqrt finite
    # and the masked output writeback discards those rows.
    me = jnp.mean(xe, axis=-1, keepdims=True)
    mo = jnp.mean(xo, axis=-1, keepdims=True)
    xe = xe - me
    xo = xo - mo
    ve = jnp.mean(xe * xe, axis=-1, keepdims=True)
    vo = jnp.mean(xo * xo, axis=-1, keepdims=True)
    xe = xe * jax.lax.rsqrt(ve + LN_EPS)
    xo = xo * jax.lax.rsqrt(vo + LN_EPS)
    zn = jnp.concatenate([xe, xo], axis=-1)          # (T2, 2C), lane-dense

    # One MXU matmul in bf16 with f32 accumulation; the packed weight already
    # places every value at its shuffled lane.  Folded LN bias added in f32.
    y = jnp.dot(zn.astype(jnp.bfloat16), w_ref[...],
                preferred_element_type=jnp.float32)
    y = y + b_ref[...]

    # Lanes [0:E) of each row are output row 2h (s=0) of that w-pair,
    # lanes [E:2E) are output row 2h+1 (s=1).  Leading-axis reshape only.
    o_ref[:, 0, :, :] = y[:, :E].reshape(R, W2, E).astype(o_ref.dtype)
    o_ref[:, 1, :, :] = y[:, E:].reshape(R, W2, E).astype(o_ref.dtype)


def prepare_params(gamma, beta, weight_t):
    """Fold the LayerNorm affine into the expansion weight and pre-permute /
    block-pack it so the kernel matmul emits pixel-shuffled lanes directly.

    weight_t: (C, 4*dim_out)  (already transposed vs. the torch Linear weight)
    Returns (w_packed (2C, 8*dim_out) bf16, b_packed (1, 8*dim_out) f32).
    Call ONCE at model init / parameter load, not per forward call.

    Shuffle mapping (W even): out[b, 2h+s, 4u+2a+p, d] = y[b, h, 2u+p, 2a+s, d]
    so per token pair (even token p=0, odd token p=1) the output lane order is
      for s in {0,1}: [even q=s | odd q=s | even q=2+s | odd q=2+s]
    with q = 2a + s and each chunk D = dim_out wide.
    """
    C, E = weight_t.shape
    D = E // 4
    wt = weight_t.astype(jnp.float32)
    wg = wt * gamma.reshape(C, 1).astype(jnp.float32)     # fold LN scale
    bq = beta.astype(jnp.float32) @ wt                     # fold LN shift, (E,)
    zeros = jnp.zeros((C, D), jnp.float32)
    cols, bias = [], []
    for s in (0, 1):
        for a in (0, 1):
            q = 2 * a + s
            wq = wg[:, q * D:(q + 1) * D]
            bqd = bq[q * D:(q + 1) * D]
            cols.append(jnp.concatenate([wq, zeros], axis=0))   # even-token rows
            cols.append(jnp.concatenate([zeros, wq], axis=0))   # odd-token rows
            bias += [bqd, bqd]
    w_packed = jnp.concatenate(cols, axis=1).astype(jnp.bfloat16)      # (2C, 2E)
    b_packed = jnp.concatenate(bias, axis=0).reshape(1, 2 * E).astype(jnp.float32)
    return w_packed, b_packed


def patch_expanding_forward(x, w_packed, b_packed, *, tile_tokens=8192):
    """x: (B, H, W, C); packed params from prepare_params.
    Returns (B, 2H, 2W, dim_out).  tile_tokens: tokens per grid step
    (raise to 16384+ on v7x; keep the step count even for megacore)."""
    B, H, W, C = x.shape
    assert W % 2 == 0, "fused pixel-shuffle path requires even W"
    assert w_packed.shape[0] == 2 * C
    E2 = w_packed.shape[1]            # 8 * dim_out
    E = E2 // 2                       # 4 * dim_out
    D = E // 4                        # dim_out
    W2 = W // 2
    rows = B * H                      # h-rows; each produces 2 output rows

    # h-rows per grid step.  Big tiles amortize the ~0.35us/step overhead of
    # this HBM-bound kernel.  Keep the packed-row count a multiple of 8 so the
    # input block obeys the (8,128) rule, unless the block is the whole array.
    r = max(1, min(rows, tile_tokens // W))
    step = 8 // math.gcd(W2, 8)
    r = max(step, (r // step) * step)
    if r >= rows:
        r = rows
    grid_rows = pl.cdiv(rows, r)
    t2 = r * W2                       # packed token pairs per step

    # Metadata-only reshape: adjacent-w token pairs packed along lanes.
    x2 = x.reshape(rows * W2, 2 * C)

    # Explicit VMEM budget: double-buffered in/out tiles + resident weight +
    # headroom for f32 intermediates, capped below physical VMEM with margin
    # for Mosaic internal scratch (v7x only has 64 MiB).
    bpe = x.dtype.itemsize
    in_b = t2 * 2 * C * bpe
    out_b = t2 * 2 * E * bpe
    need = 2 * (in_b + out_b) + 2 * (w_packed.size * 2 + E2 * 4)
    need += 2 * in_b + out_b + (8 << 20)
    try:
        cap = int(pltpu.get_tpu_info().vmem_capacity_bytes)
    except Exception:
        cap = 64 << 20                # conservative (v7x-sized) fallback
    vmem_bytes = int(min(need, cap - (16 << 20)))

    out5 = pl.pallas_call(
        _fused_patch_expand_kernel,
        out_shape=jax.ShapeDtypeStruct((rows, 2, W2, E), x.dtype),
        grid_spec=pltpu.PrefetchScalarGridSpec(
            num_scalar_prefetch=0,
            grid=(grid_rows,),
            in_specs=[
                pl.BlockSpec((t2, 2 * C), lambda i: (i, 0)),
                pl.BlockSpec((2 * C, E2), lambda i: (0, 0)),  # resident weight
                pl.BlockSpec((1, E2), lambda i: (0, 0)),      # resident bias
            ],
            out_specs=pl.BlockSpec((r, 2, W2, E), lambda i: (i, 0, 0, 0)),
        ),
        compiler_params=pltpu.CompilerParams(
            dimension_semantics=("parallel",),
            vmem_limit_bytes=vmem_bytes),
    )(x2, w_packed, b_packed)

    # (rows, 2, W2, 4D) is exactly (B, 2H, 2W, D) in row-major order:
    # metadata-only reshape, no extra HBM pass.
    return out5.reshape(B, 2 * H, 2 * W, D)


def patch_expanding_reference(x, gamma, beta, weight_t):
    """Pure-JAX f32 reference mirroring the torch forward exactly."""
    B, H, W, C = x.shape
    E = weight_t.shape[1]
    D = E // 4
    xf = x.astype(jnp.float32)
    mean = jnp.mean(xf, axis=-1, keepdims=True)
    var = jnp.mean((xf - mean) ** 2, axis=-1, keepdims=True)
    xn = (xf - mean) / jnp.sqrt(var + LN_EPS) * gamma + beta
    y = jnp.einsum('bhwc,ce->bhwe', xn, weight_t.astype(jnp.float32))
    y = y.reshape(B, H, W, 4, D)
    y = jnp.transpose(y, (0, 1, 3, 2, 4))
    y = y.reshape(B, H, 2, W, 2, D)
    y = jnp.transpose(y, (0, 1, 3, 2, 4, 5))
    return y.reshape(B, 2 * H, 2 * W, D)


def init_params(key, dim, dim_out=None):
    """Synthetic init mirroring PatchExpanding.__init__ (xavier_uniform * 0.1,
    no bias; LayerNorm weight=1, bias=0)."""
    dim_out = dim_out or dim // 2
    expand_dim = 4 * dim_out
    gamma = jnp.ones((dim,), jnp.float32)
    beta = jnp.zeros((dim,), jnp.float32)
    bound = math.sqrt(6.0 / (dim + expand_dim))
    w = jax.random.uniform(key, (expand_dim, dim), jnp.float32,
                           minval=-bound, maxval=bound) * 0.1
    weight_t = jnp.transpose(w)                    # (dim, 4*dim_out)
    return gamma, beta, weight_t, dim_out


if __name__ == "__main__":
    key = jax.random.PRNGKey(0)
    kx, kw, kg, kb = jax.random.split(key, 4)

    # dim=64 -> dim_out=32, packed matmul is (T/2,128)x(128,256); N = 512 tokens.
    B, H, W, dim = 2, 16, 16, 64
    x = jax.random.normal(kx, (B, H, W, dim), jnp.float32)

    gamma, beta, weight_t, dim_out = init_params(kw, dim)
    # Perturb the LayerNorm affine away from its identity init so the
    # fold-into-weight path is actually exercised by the check.
    gamma = gamma + 0.1 * jax.random.normal(kg, gamma.shape, jnp.float32)
    beta = beta + 0.1 * jax.random.normal(kb, beta.shape, jnp.float32)

    # Parameter packing happens once (hoisted out of the per-call path).
    w_packed, b_packed = prepare_params(gamma, beta, weight_t)

    fwd = jax.jit(patch_expanding_forward)
    out = jax.block_until_ready(fwd(x, w_packed, b_packed))
    assert out.shape == (B, 2 * H, 2 * W, dim_out), out.shape

    ref = patch_expanding_reference(x, gamma, beta, weight_t)
    max_err = float(jnp.max(jnp.abs(out - ref)))
    assert max_err < 2e-2, f"max abs err {max_err}"

    # Second run with a small tile to exercise multi-step grid + partial tail.
    out2 = patch_expanding_forward(x, w_packed, b_packed, tile_tokens=192)
    out2 = jax.block_until_ready(out2)
    max_err2 = float(jnp.max(jnp.abs(out2 - ref)))
    assert max_err2 < 2e-2, f"max abs err (tiled) {max_err2}"

    print("KERNEL_OK")
</pallas_src>

<mosaic_0001>
module attributes {stable_mosaic.version = 11 : i64} {
  func.func @_fused_patch_expand_kernel(%arg0: i32, %arg1: memref<256x128xf32, #tpu.memory_space<vmem>>, %arg2: memref<128x256xbf16, #tpu.memory_space<vmem>>, %arg3: memref<1x256xf32, #tpu.memory_space<vmem>>, %arg4: memref<32x2x8x128xf32, #tpu.memory_space<vmem>>) attributes {dimension_semantics = [#tpu.dimension_semantics<parallel>], iteration_bounds = array<i64: 1>, scalar_prefetch = 0 : i64, scratch_operands = 0 : i64, tpu.core_type = #tpu.core_type<tc>, window_params = [{transform_indices = @transform_0, window_bounds = array<i64: 256, 128>}, {pipeline_mode = #tpu.pipeline_mode<synchronous>, transform_indices = @transform_1, window_bounds = array<i64: 128, 256>}, {pipeline_mode = #tpu.pipeline_mode<synchronous>, transform_indices = @transform_2, window_bounds = array<i64: 1, 256>}, {transform_indices = @transform_3, window_bounds = array<i64: 32, 2, 8, 128>}]} {
    %c0 = arith.constant 0 : index
    %c0_0 = arith.constant 0 : index
    %0 = vector.load %arg1[%c0, %c0_0] : memref<256x128xf32, #tpu.memory_space<vmem>>, vector<256x128xf32>
    %1 = vector.extract_strided_slice %0 {offsets = [0, 0], sizes = [256, 64], strides = [1, 1]} : vector<256x128xf32> to vector<256x64xf32>
    %2 = vector.extract_strided_slice %0 {offsets = [0, 64], sizes = [256, 64], strides = [1, 1]} : vector<256x128xf32> to vector<256x64xf32>
    %cst = arith.constant dense<0.000000e+00> : vector<256xf32>
    %3 = vector.multi_reduction <add>, %1, %cst [1] : vector<256x64xf32> to vector<256xf32>
    %4 = vector.shape_cast %3 : vector<256xf32> to vector<256x1xf32>
    %cst_1 = arith.constant 6.400000e+01 : f32
    %5 = vector.broadcast %cst_1 : f32 to vector<256x1xf32>
    %6 = arith.divf %4, %5 : vector<256x1xf32>
    %cst_2 = arith.constant dense<0.000000e+00> : vector<256xf32>
    %7 = vector.multi_reduction <add>, %2, %cst_2 [1] : vector<256x64xf32> to vector<256xf32>
    %8 = vector.shape_cast %7 : vector<256xf32> to vector<256x1xf32>
    %cst_3 = arith.constant 6.400000e+01 : f32
    %9 = vector.broadcast %cst_3 : f32 to vector<256x1xf32>
    %10 = arith.divf %8, %9 : vector<256x1xf32>
    %11 = vector.broadcast %6 : vector<256x1xf32> to vector<256x64xf32>
    %12 = arith.subf %1, %11 : vector<256x64xf32>
    %13 = vector.broadcast %10 : vector<256x1xf32> to vector<256x64xf32>
    %14 = arith.subf %2, %13 : vector<256x64xf32>
    %15 = arith.mulf %12, %12 : vector<256x64xf32>
    %cst_4 = arith.constant dense<0.000000e+00> : vector<256xf32>
    %16 = vector.multi_reduction <add>, %15, %cst_4 [1] : vector<256x64xf32> to vector<256xf32>
    %17 = vector.shape_cast %16 : vector<256xf32> to vector<256x1xf32>
    %cst_5 = arith.constant 6.400000e+01 : f32
    %18 = vector.broadcast %cst_5 : f32 to vector<256x1xf32>
    %19 = arith.divf %17, %18 : vector<256x1xf32>
    %20 = arith.mulf %14, %14 : vector<256x64xf32>
    %cst_6 = arith.constant dense<0.000000e+00> : vector<256xf32>
    %21 = vector.multi_reduction <add>, %20, %cst_6 [1] : vector<256x64xf32> to vector<256xf32>
    %22 = vector.shape_cast %21 : vector<256xf32> to vector<256x1xf32>
    %cst_7 = arith.constant 6.400000e+01 : f32
    %23 = vector.broadcast %cst_7 : f32 to vector<256x1xf32>
    %24 = arith.divf %22, %23 : vector<256x1xf32>
    %cst_8 = arith.constant 9.99999974E-6 : f32
    %25 = vector.broadcast %cst_8 : f32 to vector<256x1xf32>
    %26 = arith.addf %19, %25 : vector<256x1xf32>
    %27 = math.rsqrt %26 : vector<256x1xf32>
    %28 = vector.broadcast %27 : vector<256x1xf32> to vector<256x64xf32>
    %29 = arith.mulf %12, %28 : vector<256x64xf32>
    %cst_9 = arith.constant 9.99999974E-6 : f32
    %30 = vector.broadcast %cst_9 : f32 to vector<256x1xf32>
    %31 = arith.addf %24, %30 : vector<256x1xf32>
    %32 = math.rsqrt %31 : vector<256x1xf32>
    %33 = vector.broadcast %32 : vector<256x1xf32> to vector<256x64xf32>
    %34 = arith.mulf %14, %33 : vector<256x64xf32>
    %35 = tpu.concatenate %29, %34 in 1 : vector<256x64xf32>, vector<256x64xf32> -> vector<256x128xf32>
    %36 = arith.truncf %35 : vector<256x128xf32> to vector<256x128xbf16>
    %c0_10 = arith.constant 0 : index
    %c0_11 = arith.constant 0 : index
    %37 = vector.load %arg2[%c0_10, %c0_11] : memref<128x256xbf16, #tpu.memory_space<vmem>>, vector<128x256xbf16>
    %cst_12 = arith.constant dense<0.000000e+00> : vector<256x256xf32>
    %38 = tpu.matmul %36, %37, %cst_12 {dimension_numbers = #tpu.dot_dimension_numbers<[1], [0], [0], [1], [0, 0, 1, 1], [], []>} : vector<256x128xbf16>, vector<128x256xbf16>, vector<256x256xf32> -> vector<256x256xf32>
    %c0_13 = arith.constant 0 : index
    %c0_14 = arith.constant 0 : index
    %39 = vector.load %arg3[%c0_13, %c0_14] : memref<1x256xf32, #tpu.memory_space<vmem>>, vector<1x256xf32>
    %40 = vector.broadcast %39 : vector<1x256xf32> to vector<256x256xf32>
    %41 = arith.addf %38, %40 : vector<256x256xf32>
    %42 = vector.extract_strided_slice %41 {offsets = [0, 0], sizes = [256, 128], strides = [1, 1]} : vector<256x256xf32> to vector<256x128xf32>
    %43 = vector.shape_cast %42 : vector<256x128xf32> to vector<32x8x128xf32>
    %c0_15 = arith.constant 0 : index
    %c0_16 = arith.constant 0 : index
    %c0_17 = arith.constant 0 : index
    %c0_18 = arith.constant 0 : index
    %44 = vector.load %arg4[%c0_15, %c0_16, %c0_17, %c0_18] : memref<32x2x8x128xf32, #tpu.memory_space<vmem>>, vector<32x1x8x128xf32>
    %45 = vector.shape_cast %44 : vector<32x1x8x128xf32> to vector<32x8x128xf32>
    %46 = vector.shape_cast %43 : vector<32x8x128xf32> to vector<32x1x8x128xf32>
    tpu.vector_store %arg4[%c0_15, %c0_16, %c0_17, %c0_18], %46 {strides = array<i32>} : memref<32x2x8x128xf32, #tpu.memory_space<vmem>>, vector<32x1x8x128xf32>,
    %47 = vector.extract_strided_slice %41 {offsets = [0, 128], sizes = [256, 128], strides = [1, 1]} : vector<256x256xf32> to vector<256x128xf32>
    %48 = vector.shape_cast %47 : vector<256x128xf32> to vector<32x8x128xf32>
    %c0_19 = arith.constant 0 : index
    %c1 = arith.constant 1 : index
    %c0_20 = arith.constant 0 : index
    %c0_21 = arith.constant 0 : index
    %49 = vector.load %arg4[%c0_19, %c1, %c0_20, %c0_21] : memref<32x2x8x128xf32, #tpu.memory_space<vmem>>, vector<32x1x8x128xf32>
    %50 = vector.shape_cast %49 : vector<32x1x8x128xf32> to vector<32x8x128xf32>
    %51 = vector.shape_cast %48 : vector<32x8x128xf32> to vector<32x1x8x128xf32>
    tpu.vector_store %arg4[%c0_19, %c1, %c0_20, %c0_21], %51 {strides = array<i32>} : memref<32x2x8x128xf32, #tpu.memory_space<vmem>>, vector<32x1x8x128xf32>,
    return
  }
  func.func @transform_0(%arg0: i32) -> (i32, i32) {
    %c0_i32 = arith.constant 0 : i32
    %c0_i32_0 = arith.constant 0 : i32
    return %arg0, %c0_i32 : i32, i32
  }
  func.func @transform_1(%arg0: i32) -> (i32, i32) {
    %c0_i32 = arith.constant 0 : i32
    %c0_i32_0 = arith.constant 0 : i32
    %c0_i32_1 = arith.constant 0 : i32
    return %c0_i32, %c0_i32_0 : i32, i32
  }
  func.func @transform_2(%arg0: i32) -> (i32, i32) {
    %c0_i32 = arith.constant 0 : i32
    %c0_i32_0 = arith.constant 0 : i32
    %c0_i32_1 = arith.constant 0 : i32
    return %c0_i32, %c0_i32_0 : i32, i32
  }
  func.func @transform_3(%arg0: i32) -> (i32, i32, i32, i32) {
    %c0_i32 = arith.constant 0 : i32
    %c0_i32_0 = arith.constant 0 : i32
    %c0_i32_1 = arith.constant 0 : i32
    %c0_i32_2 = arith.constant 0 : i32
    return %arg0, %c0_i32, %c0_i32_0, %c0_i32_1 : i32, i32, i32, i32
  }
}

</mosaic_0001>

<llo_original>
// kernel: patch_expanding_forward.1
$region0: #{patch_expanding_forward.1}
  #allocation0 [shape = 'u32[]', space=smem, size = 0x4, offset = 0x4, fixed_abs, tag = 'smem constant byte address 0x4 - core index']
  #allocation1 [shape = 'u32[144,128]{1,0:T(1,128)}', space=vmem, size = 0x12000, scoped, tag = 'internal scratch']
  %s0 = inlined_call_operand.vmem [shape: f32[256,128], index: 0, kind: input, shape index: {}]
  %s1 = inlined_call_operand.vmem [shape: bf16[128,256], index: 1, kind: input, shape index: {}]
  %s2 = inlined_call_operand.vmem [shape: f32[1,256], index: 2, kind: input, shape index: {}]
  %s3 = inlined_call_operand.vmem [shape: f32[32,2,8,128], index: 3, kind: output, shape index: {}]
  %s4 = sld [smem:[#allocation0]]
  $region22: #{patch_expanding_forward.1} parent=0
    _
  %s6 = ssub.s32 1, %s4
  %s7 = scalar_select 0, %s6, %s4
  // Predicated region
  $region2: #{patch_expanding_forward.1} parent=0 // pred_check
    _
  $region3: #{patch_expanding_forward.1} parent=0 // pred_check_branch
    %9 = sbr.rel (0) target = $region5
  $region4: #{patch_expanding_forward.1} parent=0 // pred_region
    _
  $region5: #{patch_expanding_forward.1} parent=0 // pred_fallthru
    _
  // Predicated region
  $region6: #{patch_expanding_forward.1} parent=0 // pred_check
    _
  $region7: #{patch_expanding_forward.1} parent=0 // pred_check_branch
    %11 = sbr.rel (0) target = $region9
  $region8: #{patch_expanding_forward.1} parent=0 // pred_region
    _
  $region9: #{patch_expanding_forward.1} parent=0 // pred_fallthru
    _
  // Predicated region
  $region10: #{patch_expanding_forward.1} parent=0 // pred_check
    _
  $region11: #{patch_expanding_forward.1} parent=0 // pred_check_branch
    %13 = sbr.rel (0) target = $region13
  $region12: #{patch_expanding_forward.1} parent=0 // pred_region
    _
  $region13: #{patch_expanding_forward.1} parent=0 // pred_fallthru
    _
  %v15 = vld [vmem:[%s0] sm:$0xff]
  %v16 = vld [vmem:[%s0 + $0x8] sm:$0xff]
  %v17 = vld [vmem:[%s0 + $0x10] sm:$0xff]
  %v18 = vld [vmem:[%s0 + $0x18] sm:$0xff]
  %v19 = vld [vmem:[%s0 + $0x20] sm:$0xff]
  %v20 = vld [vmem:[%s0 + $0x28] sm:$0xff]
  %v21 = vld [vmem:[%s0 + $0x30] sm:$0xff]
  %v22 = vld [vmem:[%s0 + $0x38] sm:$0xff]
  %v23 = vld [vmem:[%s0 + $0x40] sm:$0xff]
  %v24 = vld [vmem:[%s0 + $0x48] sm:$0xff]
  %v25 = vld [vmem:[%s0 + $0x50] sm:$0xff]
  %v26 = vld [vmem:[%s0 + $0x58] sm:$0xff]
  %v27 = vld [vmem:[%s0 + $0x60] sm:$0xff]
  %v28 = vld [vmem:[%s0 + $0x68] sm:$0xff]
  %v29 = vld [vmem:[%s0 + $0x70] sm:$0xff]
  %v30 = vld [vmem:[%s0 + $0x78] sm:$0xff]
  %v31 = vld [vmem:[%s0 + $0x80] sm:$0xff]
  %v32 = vld [vmem:[%s0 + $0x88] sm:$0xff]
  %v33 = vld [vmem:[%s0 + $0x90] sm:$0xff]
  %v34 = vld [vmem:[%s0 + $0x98] sm:$0xff]
  %v35 = vld [vmem:[%s0 + $0xa0] sm:$0xff]
  %v36 = vld [vmem:[%s0 + $0xa8] sm:$0xff]
  %v37 = vld [vmem:[%s0 + $0xb0] sm:$0xff]
  %v38 = vld [vmem:[%s0 + $0xb8] sm:$0xff]
  %v39 = vld [vmem:[%s0 + $0xc0] sm:$0xff]
  %v40 = vld [vmem:[%s0 + $0xc8] sm:$0xff]
  %v41 = vld [vmem:[%s0 + $0xd0] sm:$0xff]
  %v42 = vld [vmem:[%s0 + $0xd8] sm:$0xff]
  %v43 = vld [vmem:[%s0 + $0xe0] sm:$0xff]
  %v44 = vld [vmem:[%s0 + $0xe8] sm:$0xff]
  %v45 = vld [vmem:[%s0 + $0xf0] sm:$0xff]
  %v46 = vld [vmem:[%s0 + $0xf8] sm:$0xff]
  %vm47 = vcmask 523264
  %v48 = vsel %vm47, %v15, 0.0
  %49 = vadd.xlane.f32.xlu0 %v48
  %v50 = vpop.xlane.xlu0 %49
  %v51 = vsel %vm47, %v16, 0.0
  %52 = vadd.xlane.f32.xlu0 %v51
  %v53 = vpop.xlane.xlu0 %52
  %v54 = vsel %vm47, %v17, 0.0
  %55 = vadd.xlane.f32.xlu0 %v54
  %v56 = vpop.xlane.xlu0 %55
  %v57 = vsel %vm47, %v18, 0.0
  %58 = vadd.xlane.f32.xlu0 %v57
  %v59 = vpop.xlane.xlu0 %58
  %v60 = vsel %vm47, %v19, 0.0
  %61 = vadd.xlane.f32.xlu0 %v60
  %v62 = vpop.xlane.xlu0 %61
  %v63 = vsel %vm47, %v20, 0.0
  %64 = vadd.xlane.f32.xlu0 %v63
  %v65 = vpop.xlane.xlu0 %64
  %v66 = vsel %vm47, %v21, 0.0
  %67 = vadd.xlane.f32.xlu0 %v66
  %v68 = vpop.xlane.xlu0 %67
  %v69 = vsel %vm47, %v22, 0.0
  %70 = vadd.xlane.f32.xlu0 %v69
  %v71 = vpop.xlane.xlu0 %70
  %v72 = vsel %vm47, %v23, 0.0
  %73 = vadd.xlane.f32.xlu0 %v72
  %v74 = vpop.xlane.xlu0 %73
  %v75 = vsel %vm47, %v24, 0.0
  %76 = vadd.xlane.f32.xlu0 %v75
  %v77 = vpop.xlane.xlu0 %76
  %v78 = vsel %vm47, %v25, 0.0
  %79 = vadd.xlane.f32.xlu0 %v78
  %v80 = vpop.xlane.xlu0 %79
  %v81 = vsel %vm47, %v26, 0.0
  %82 = vadd.xlane.f32.xlu0 %v81
  %v83 = vpop.xlane.xlu0 %82
  %v84 = vsel %vm47, %v27, 0.0
  %85 = vadd.xlane.f32.xlu0 %v84
  %v86 = vpop.xlane.xlu0 %85
  %v87 = vsel %vm47, %v28, 0.0
  %88 = vadd.xlane.f32.xlu0 %v87
  %v89 = vpop.xlane.xlu0 %88
  %v90 = vsel %vm47, %v29, 0.0
  %91 = vadd.xlane.f32.xlu0 %v90
  %v92 = vpop.xlane.xlu0 %91
  %v93 = vsel %vm47, %v30, 0.0
  %94 = vadd.xlane.f32.xlu0 %v93
  %v95 = vpop.xlane.xlu0 %94
  %v96 = vsel %vm47, %v31, 0.0
  %97 = vadd.xlane.f32.xlu0 %v96
  %v98 = vpop.xlane.xlu0 %97
  %v99 = vsel %vm47, %v32, 0.0
  %100 = vadd.xlane.f32.xlu0 %v99
  %v101 = vpop.xlane.xlu0 %100
  %v102 = vsel %vm47, %v33, 0.0
  %103 = vadd.xlane.f32.xlu0 %v102
  %v104 = vpop.xlane.xlu0 %103
  %v105 = vsel %vm47, %v34, 0.0
  %106 = vadd.xlane.f32.xlu0 %v105
  %v107 = vpop.xlane.xlu0 %106
  %v108 = vsel %vm47, %v35, 0.0
  %109 = vadd.xlane.f32.xlu0 %v108
  %v110 = vpop.xlane.xlu0 %109
  %v111 = vsel %vm47, %v36, 0.0
  %112 = vadd.xlane.f32.xlu0 %v111
  %v113 = vpop.xlane.xlu0 %112
  %v114 = vsel %vm47, %v37, 0.0
  %115 = vadd.xlane.f32.xlu0 %v114
  %v116 = vpop.xlane.xlu0 %115
  %v117 = vsel %vm47, %v38, 0.0
  %118 = vadd.xlane.f32.xlu0 %v117
  %v119 = vpop.xlane.xlu0 %118
  %v120 = vsel %vm47, %v39, 0.0
  %121 = vadd.xlane.f32.xlu0 %v120
  %v122 = vpop.xlane.xlu0 %121
  %v123 = vsel %vm47, %v40, 0.0
  %124 = vadd.xlane.f32.xlu0 %v123
  %v125 = vpop.xlane.xlu0 %124
  %v126 = vsel %vm47, %v41, 0.0
  %127 = vadd.xlane.f32.xlu0 %v126
  %v128 = vpop.xlane.xlu0 %127
  %v129 = vsel %vm47, %v42, 0.0
  %130 = vadd.xlane.f32.xlu0 %v129
  %v131 = vpop.xlane.xlu0 %130
  %v132 = vsel %vm47, %v43, 0.0
  %133 = vadd.xlane.f32.xlu0 %v132
  %v134 = vpop.xlane.xlu0 %133
  %v135 = vsel %vm47, %v44, 0.0
  %136 = vadd.xlane.f32.xlu0 %v135
  %v137 = vpop.xlane.xlu0 %136
  %v138 = vsel %vm47, %v45, 0.0
  %139 = vadd.xlane.f32.xlu0 %v138
  %v140 = vpop.xlane.xlu0 %139
  %v141 = vsel %vm47, %v46, 0.0
  %142 = vadd.xlane.f32.xlu0 %v141
  %v143 = vpop.xlane.xlu0 %142
  %v144 = vrcp.pop 64.0
  %v145 = vmul.f32 %v50, %v144
  %v146 = vmul.f32 %v53, %v144
  %v147 = vmul.f32 %v56, %v144
  %v148 = vmul.f32 %v59, %v144
  %v149 = vmul.f32 %v62, %v144
  %v150 = vmul.f32 %v65, %v144
  %v151 = vmul.f32 %v68, %v144
  %v152 = vmul.f32 %v71, %v144
  %v153 = vmul.f32 %v74, %v144
  %v154 = vmul.f32 %v77, %v144
  %v155 = vmul.f32 %v80, %v144
  %v156 = vmul.f32 %v83, %v144
  %v157 = vmul.f32 %v86, %v144
  %v158 = vmul.f32 %v89, %v144
  %v159 = vmul.f32 %v92, %v144
  %v160 = vmul.f32 %v95, %v144
  %v161 = vmul.f32 %v98, %v144
  %v162 = vmul.f32 %v101, %v144
  %v163 = vmul.f32 %v104, %v144
  %v164 = vmul.f32 %v107, %v144
  %v165 = vmul.f32 %v110, %v144
  %v166 = vmul.f32 %v113, %v144
  %v167 = vmul.f32 %v116, %v144
  %v168 = vmul.f32 %v119, %v144
  %v169 = vmul.f32 %v122, %v144
  %v170 = vmul.f32 %v125, %v144
  %v171 = vmul.f32 %v128, %v144
  %v172 = vmul.f32 %v131, %v144
  %v173 = vmul.f32 %v134, %v144
  %v174 = vmul.f32 %v137, %v144
  %v175 = vmul.f32 %v140, %v144
  %v176 = vmul.f32 %v143, %v144
  %209 = vrot.lane.b32.xlu0 %v15, 64
  %v210 = vpop.permute.xlu0 %209
  %211 = vrot.lane.b32.xlu0 %v16, 64
  %v212 = vpop.permute.xlu0 %211
  %213 = vrot.lane.b32.xlu0 %v17, 64
  %v214 = vpop.permute.xlu0 %213
  %215 = vrot.lane.b32.xlu0 %v18, 64
  %v216 = vpop.permute.xlu0 %215
  %217 = vrot.lane.b32.xlu0 %v19, 64
  %v218 = vpop.permute.xlu0 %217
  %219 = vrot.lane.b32.xlu0 %v20, 64
  %v220 = vpop.permute.xlu0 %219
  %221 = vrot.lane.b32.xlu0 %v21, 64
  %v222 = vpop.permute.xlu0 %221
  %223 = vrot.lane.b32.xlu0 %v22, 64
  %v224 = vpop.permute.xlu0 %223
  %225 = vrot.lane.b32.xlu0 %v23, 64
  %v226 = vpop.permute.xlu0 %225
  %227 = vrot.lane.b32.xlu0 %v24, 64
  %v228 = vpop.permute.xlu0 %227
  %229 = vrot.lane.b32.xlu0 %v25, 64
  %v230 = vpop.permute.xlu0 %229
  %231 = vrot.lane.b32.xlu0 %v26, 64
  %v232 = vpop.permute.xlu0 %231
  %233 = vrot.lane.b32.xlu0 %v27, 64
  %v234 = vpop.permute.xlu0 %233
  %235 = vrot.lane.b32.xlu0 %v28, 64
  %v236 = vpop.permute.xlu0 %235
  %237 = vrot.lane.b32.xlu0 %v29, 64
  %v238 = vpop.permute.xlu0 %237
  %239 = vrot.lane.b32.xlu0 %v30, 64
  %v240 = vpop.permute.xlu0 %239
  %241 = vrot.lane.b32.xlu0 %v31, 64
  %v242 = vpop.permute.xlu0 %241
  %243 = vrot.lane.b32.xlu0 %v32, 64
  %v244 = vpop.permute.xlu0 %243
  %245 = vrot.lane.b32.xlu0 %v33, 64
  %v246 = vpop.permute.xlu0 %245
  %247 = vrot.lane.b32.xlu0 %v34, 64
  %v248 = vpop.permute.xlu0 %247
  %249 = vrot.lane.b32.xlu0 %v35, 64
  %v250 = vpop.permute.xlu0 %249
  %251 = vrot.lane.b32.xlu0 %v36, 64
  %v252 = vpop.permute.xlu0 %251
  %253 = vrot.lane.b32.xlu0 %v37, 64
  %v254 = vpop.permute.xlu0 %253
  %255 = vrot.lane.b32.xlu0 %v38, 64
  %v256 = vpop.permute.xlu0 %255
  %257 = vrot.lane.b32.xlu0 %v39, 64
  %v258 = vpop.permute.xlu0 %257
  %259 = vrot.lane.b32.xlu0 %v40, 64
  %v260 = vpop.permute.xlu0 %259
  %261 = vrot.lane.b32.xlu0 %v41, 64
  %v262 = vpop.permute.xlu0 %261
  %263 = vrot.lane.b32.xlu0 %v42, 64
  %v264 = vpop.permute.xlu0 %263
  %265 = vrot.lane.b32.xlu0 %v43, 64
  %v266 = vpop.permute.xlu0 %265
  %267 = vrot.lane.b32.xlu0 %v44, 64
  %v268 = vpop.permute.xlu0 %267
  %269 = vrot.lane.b32.xlu0 %v45, 64
  %v270 = vpop.permute.xlu0 %269
  %271 = vrot.lane.b32.xlu0 %v46, 64
  %v272 = vpop.permute.xlu0 %271
  %v305 = vsel %vm47, %v210, 0.0
  %306 = vadd.xlane.f32.xlu0 %v305
  %v307 = vpop.xlane.xlu0 %306
  %v308 = vsel %vm47, %v212, 0.0
  %309 = vadd.xlane.f32.xlu0 %v308
  %v310 = vpop.xlane.xlu0 %309
  %v311 = vsel %vm47, %v214, 0.0
  %312 = vadd.xlane.f32.xlu0 %v311
  %v313 = vpop.xlane.xlu0 %312
  %v314 = vsel %vm47, %v216, 0.0
  %315 = vadd.xlane.f32.xlu0 %v314
  %v316 = vpop.xlane.xlu0 %315
  %v317 = vsel %vm47, %v218, 0.0
  %318 = vadd.xlane.f32.xlu0 %v317
  %v319 = vpop.xlane.xlu0 %318
  %v320 = vsel %vm47, %v220, 0.0
  %321 = vadd.xlane.f32.xlu0 %v320
  %v322 = vpop.xlane.xlu0 %321
  %v323 = vsel %vm47, %v222, 0.0
  %324 = vadd.xlane.f32.xlu0 %v323
  %v325 = vpop.xlane.xlu0 %324
  %v326 = vsel %vm47, %v224, 0.0
  %327 = vadd.xlane.f32.xlu0 %v326
  %v328 = vpop.xlane.xlu0 %327
  %v329 = vsel %vm47, %v226, 0.0
  %330 = vadd.xlane.f32.xlu0 %v329
  %v331 = vpop.xlane.xlu0 %330
  %v332 = vsel %vm47, %v228, 0.0
  %333 = vadd.xlane.f32.xlu0 %v332
  %v334 = vpop.xlane.xlu0 %333
  %v335 = vsel %vm47, %v230, 0.0
  %336 = vadd.xlane.f32.xlu0 %v335
  %v337 = vpop.xlane.xlu0 %336
  %v338 = vsel %vm47, %v232, 0.0
  %339 = vadd.xlane.f32.xlu0 %v338
  %v340 = vpop.xlane.xlu0 %339
  %v341 = vsel %vm47, %v234, 0.0
  %342 = vadd.xlane.f32.xlu0 %v341
  %v343 = vpop.xlane.xlu0 %342
  %v344 = vsel %vm47, %v236, 0.0
  %345 = vadd.xlane.f32.xlu0 %v344
  %v346 = vpop.xlane.xlu0 %345
  %v347 = vsel %vm47, %v238, 0.0
  %348 = vadd.xlane.f32.xlu0 %v347
  %v349 = vpop.xlane.xlu0 %348
  %v350 = vsel %vm47, %v240, 0.0
  %351 = vadd.xlane.f32.xlu0 %v350
  %v352 = vpop.xlane.xlu0 %351
  %v353 = vsel %vm47, %v242, 0.0
  %354 = vadd.xlane.f32.xlu0 %v353
  %v355 = vpop.xlane.xlu0 %354
  %v356 = vsel %vm47, %v244, 0.0
  %357 = vadd.xlane.f32.xlu0 %v356
  %v358 = vpop.xlane.xlu0 %357
  %v359 = vsel %vm47, %v246, 0.0
  %360 = vadd.xlane.f32.xlu0 %v359
  %v361 = vpop.xlane.xlu0 %360
  %v362 = vsel %vm47, %v248, 0.0
  %363 = vadd.xlane.f32.xlu0 %v362
  %v364 = vpop.xlane.xlu0 %363
  %v365 = vsel %vm47, %v250, 0.0
  %366 = vadd.xlane.f32.xlu0 %v365
  %v367 = vpop.xlane.xlu0 %366
  %v368 = vsel %vm47, %v252, 0.0
  %369 = vadd.xlane.f32.xlu0 %v368
  %v370 = vpop.xlane.xlu0 %369
  %v371 = vsel %vm47, %v254, 0.0
  %372 = vadd.xlane.f32.xlu0 %v371
  %v373 = vpop.xlane.xlu0 %372
  %v374 = vsel %vm47, %v256, 0.0
  %375 = vadd.xlane.f32.xlu0 %v374
  %v376 = vpop.xlane.xlu0 %375
  %v377 = vsel %vm47, %v258, 0.0
  %378 = vadd.xlane.f32.xlu0 %v377
  %v379 = vpop.xlane.xlu0 %378
  %v380 = vsel %vm47, %v260, 0.0
  %381 = vadd.xlane.f32.xlu0 %v380
  %v382 = vpop.xlane.xlu0 %381
  %v383 = vsel %vm47, %v262, 0.0
  %384 = vadd.xlane.f32.xlu0 %v383
  %v385 = vpop.xlane.xlu0 %384
  %v386 = vsel %vm47, %v264, 0.0
  %387 = vadd.xlane.f32.xlu0 %v386
  %v388 = vpop.xlane.xlu0 %387
  %v389 = vsel %vm47, %v266, 0.0
  %390 = vadd.xlane.f32.xlu0 %v389
  %v391 = vpop.xlane.xlu0 %390
  %v392 = vsel %vm47, %v268, 0.0
  %393 = vadd.xlane.f32.xlu0 %v392
  %v394 = vpop.xlane.xlu0 %393
  %v395 = vsel %vm47, %v270, 0.0
  %396 = vadd.xlane.f32.xlu0 %v395
  %v397 = vpop.xlane.xlu0 %396
  %v398 = vsel %vm47, %v272, 0.0
  %399 = vadd.xlane.f32.xlu0 %v398
  %v400 = vpop.xlane.xlu0 %399
  %v401 = vmul.f32 %v307, %v144
  %v402 = vmul.f32 %v310, %v144
  %v403 = vmul.f32 %v313, %v144
  %v404 = vmul.f32 %v316, %v144
  %v405 = vmul.f32 %v319, %v144
  %v406 = vmul.f32 %v322, %v144
  %v407 = vmul.f32 %v325, %v144
  %v408 = vmul.f32 %v328, %v144
  %v409 = vmul.f32 %v331, %v144
  %v410 = vmul.f32 %v334, %v144
  %v411 = vmul.f32 %v337, %v144
  %v412 = vmul.f32 %v340, %v144
  %v413 = vmul.f32 %v343, %v144
  %v414 = vmul.f32 %v346, %v144
  %v415 = vmul.f32 %v349, %v144
  %v416 = vmul.f32 %v352, %v144
  %v417 = vmul.f32 %v355, %v144
  %v418 = vmul.f32 %v358, %v144
  %v419 = vmul.f32 %v361, %v144
  %v420 = vmul.f32 %v364, %v144
  %v421 = vmul.f32 %v367, %v144
  %v422 = vmul.f32 %v370, %v144
  %v423 = vmul.f32 %v373, %v144
  %v424 = vmul.f32 %v376, %v144
  %v425 = vmul.f32 %v379, %v144
  %v426 = vmul.f32 %v382, %v144
  %v427 = vmul.f32 %v385, %v144
  %v428 = vmul.f32 %v388, %v144
  %v429 = vmul.f32 %v391, %v144
  %v430 = vmul.f32 %v394, %v144
  %v431 = vmul.f32 %v397, %v144
  %v432 = vmul.f32 %v400, %v144
  %v433 = vsub.f32 %v15, %v145
  %v434 = vsub.f32 %v16, %v146
  %v435 = vsub.f32 %v17, %v147
  %v436 = vsub.f32 %v18, %v148
  %v437 = vsub.f32 %v19, %v149
  %v438 = vsub.f32 %v20, %v150
  %v439 = vsub.f32 %v21, %v151
  %v440 = vsub.f32 %v22, %v152
  %v441 = vsub.f32 %v23, %v153
  %v442 = vsub.f32 %v24, %v154
  %v443 = vsub.f32 %v25, %v155
  %v444 = vsub.f32 %v26, %v156
  %v445 = vsub.f32 %v27, %v157
  %v446 = vsub.f32 %v28, %v158
  %v447 = vsub.f32 %v29, %v159
  %v448 = vsub.f32 %v30, %v160
  %v449 = vsub.f32 %v31, %v161
  %v450 = vsub.f32 %v32, %v162
  %v451 = vsub.f32 %v33, %v163
  %v452 = vsub.f32 %v34, %v164
  %v453 = vsub.f32 %v35, %v165
  %v454 = vsub.f32 %v36, %v166
  %v455 = vsub.f32 %v37, %v167
  %v456 = vsub.f32 %v38, %v168
  %v457 = vsub.f32 %v39, %v169
  %v458 = vsub.f32 %v40, %v170
  %v459 = vsub.f32 %v41, %v171
  %v460 = vsub.f32 %v42, %v172
  %v461 = vsub.f32 %v43, %v173
  %v462 = vsub.f32 %v44, %v174
  %v463 = vsub.f32 %v45, %v175
  %v464 = vsub.f32 %v46, %v176
  %v465 = vsub.f32 %v15, %v401
  %v466 = vsub.f32 %v16, %v402
  %v467 = vsub.f32 %v17, %v403
  %v468 = vsub.f32 %v18, %v404
  %v469 = vsub.f32 %v19, %v405
  %v470 = vsub.f32 %v20, %v406
  %v471 = vsub.f32 %v21, %v407
  %v472 = vsub.f32 %v22, %v408
  %v473 = vsub.f32 %v23, %v409
  %v474 = vsub.f32 %v24, %v410
  %v475 = vsub.f32 %v25, %v411
  %v476 = vsub.f32 %v26, %v412
  %v477 = vsub.f32 %v27, %v413
  %v478 = vsub.f32 %v28, %v414
  %v479 = vsub.f32 %v29, %v415
  %v480 = vsub.f32 %v30, %v416
  %v481 = vsub.f32 %v31, %v417
  %v482 = vsub.f32 %v32, %v418
  %v483 = vsub.f32 %v33, %v419
  %v484 = vsub.f32 %v34, %v420
  %v485 = vsub.f32 %v35, %v421
  %v486 = vsub.f32 %v36, %v422
  %v487 = vsub.f32 %v37, %v423
  %v488 = vsub.f32 %v38, %v424
  %v489 = vsub.f32 %v39, %v425
  %v490 = vsub.f32 %v40, %v426
  %v491 = vsub.f32 %v41, %v427
  %v492 = vsub.f32 %v42, %v428
  %v493 = vsub.f32 %v43, %v429
  %v494 = vsub.f32 %v44, %v430
  %v495 = vsub.f32 %v45, %v431
  %v496 = vsub.f32 %v46, %v432
  %v497 = vmul.f32 %v433, %v433
  %v498 = vmul.f32 %v434, %v434
  %v499 = vmul.f32 %v435, %v435
  %v500 = vmul.f32 %v436, %v436
  %v501 = vmul.f32 %v437, %v437
  %v502 = vmul.f32 %v438, %v438
  %v503 = vmul.f32 %v439, %v439
  %v504 = vmul.f32 %v440, %v440
  %v505 = vmul.f32 %v441, %v441
  %v506 = vmul.f32 %v442, %v442
  %v507 = vmul.f32 %v443, %v443
  %v508 = vmul.f32 %v444, %v444
  %v509 = vmul.f32 %v445, %v445
  %v510 = vmul.f32 %v446, %v446
  %v511 = vmul.f32 %v447, %v447
  %v512 = vmul.f32 %v448, %v448
  %v513 = vmul.f32 %v449, %v449
  %v514 = vmul.f32 %v450, %v450
  %v515 = vmul.f32 %v451, %v451
  %v516 = vmul.f32 %v452, %v452
  %v517 = vmul.f32 %v453, %v453
  %v518 = vmul.f32 %v454, %v454
  %v519 = vmul.f32 %v455, %v455
  %v520 = vmul.f32 %v456, %v456
  %v521 = vmul.f32 %v457, %v457
  %v522 = vmul.f32 %v458, %v458
  %v523 = vmul.f32 %v459, %v459
  %v524 = vmul.f32 %v460, %v460
  %v525 = vmul.f32 %v461, %v461
  %v526 = vmul.f32 %v462, %v462
  %v527 = vmul.f32 %v463, %v463
  %v528 = vmul.f32 %v464, %v464
  %v529 = vsel %vm47, %v497, 0.0
  %530 = vadd.xlane.f32.xlu0 %v529
  %v531 = vpop.xlane.xlu0 %530
  %v532 = vsel %vm47, %v498, 0.0
  %533 = vadd.xlane.f32.xlu0 %v532
  %v534 = vpop.xlane.xlu0 %533
  %v535 = vsel %vm47, %v499, 0.0
  %536 = vadd.xlane.f32.xlu0 %v535
  %v537 = vpop.xlane.xlu0 %536
  %v538 = vsel %vm47, %v500, 0.0
  %539 = vadd.xlane.f32.xlu0 %v538
  %v540 = vpop.xlane.xlu0 %539
  %v541 = vsel %vm47, %v501, 0.0
  %542 = vadd.xlane.f32.xlu0 %v541
  %v543 = vpop.xlane.xlu0 %542
  %v544 = vsel %vm47, %v502, 0.0
  %545 = vadd.xlane.f32.xlu0 %v544
  %v546 = vpop.xlane.xlu0 %545
  %v547 = vsel %vm47, %v503, 0.0
  %548 = vadd.xlane.f32.xlu0 %v547
  %v549 = vpop.xlane.xlu0 %548
  %v550 = vsel %vm47, %v504, 0.0
  %551 = vadd.xlane.f32.xlu0 %v550
  %v552 = vpop.xlane.xlu0 %551
  %v553 = vsel %vm47, %v505, 0.0
  %554 = vadd.xlane.f32.xlu0 %v553
  %v555 = vpop.xlane.xlu0 %554
  %v556 = vsel %vm47, %v506, 0.0
  %557 = vadd.xlane.f32.xlu0 %v556
  %v558 = vpop.xlane.xlu0 %557
  %v559 = vsel %vm47, %v507, 0.0
  %560 = vadd.xlane.f32.xlu0 %v559
  %v561 = vpop.xlane.xlu0 %560
  %v562 = vsel %vm47, %v508, 0.0
  %563 = vadd.xlane.f32.xlu0 %v562
  %v564 = vpop.xlane.xlu0 %563
  %v565 = vsel %vm47, %v509, 0.0
  %566 = vadd.xlane.f32.xlu0 %v565
  %v567 = vpop.xlane.xlu0 %566
  %v568 = vsel %vm47, %v510, 0.0
  %569 = vadd.xlane.f32.xlu0 %v568
  %v570 = vpop.xlane.xlu0 %569
  %v571 = vsel %vm47, %v511, 0.0
  %572 = vadd.xlane.f32.xlu0 %v571
  %v573 = vpop.xlane.xlu0 %572
  %v574 = vsel %vm47, %v512, 0.0
  %575 = vadd.xlane.f32.xlu0 %v574
  %v576 = vpop.xlane.xlu0 %575
  %v577 = vsel %vm47, %v513, 0.0
  %578 = vadd.xlane.f32.xlu0 %v577
  %v579 = vpop.xlane.xlu0 %578
  %v580 = vsel %vm47, %v514, 0.0
  %581 = vadd.xlane.f32.xlu0 %v580
  %v582 = vpop.xlane.xlu0 %581
  %v583 = vsel %vm47, %v515, 0.0
  %584 = vadd.xlane.f32.xlu0 %v583
  %v585 = vpop.xlane.xlu0 %584
  %v586 = vsel %vm47, %v516, 0.0
  %587 = vadd.xlane.f32.xlu0 %v586
  %v588 = vpop.xlane.xlu0 %587
  %v589 = vsel %vm47, %v517, 0.0
  %590 = vadd.xlane.f32.xlu0 %v589
  %v591 = vpop.xlane.xlu0 %590
  %v592 = vsel %vm47, %v518, 0.0
  %593 = vadd.xlane.f32.xlu0 %v592
  %v594 = vpop.xlane.xlu0 %593
  %v595 = vsel %vm47, %v519, 0.0
  %596 = vadd.xlane.f32.xlu0 %v595
  %v597 = vpop.xlane.xlu0 %596
  %v598 = vsel %vm47, %v520, 0.0
  %599 = vadd.xlane.f32.xlu0 %v598
  %v600 = vpop.xlane.xlu0 %599
  %v601 = vsel %vm47, %v521, 0.0
  %602 = vadd.xlane.f32.xlu0 %v601
  %v603 = vpop.xlane.xlu0 %602
  %v604 = vsel %vm47, %v522, 0.0
  %605 = vadd.xlane.f32.xlu0 %v604
  %v606 = vpop.xlane.xlu0 %605
  %v607 = vsel %vm47, %v523, 0.0
  %608 = vadd.xlane.f32.xlu0 %v607
  %v609 = vpop.xlane.xlu0 %608
  %v610 = vsel %vm47, %v524, 0.0
  %611 = vadd.xlane.f32.xlu0 %v610
  %v612 = vpop.xlane.xlu0 %611
  %v613 = vsel %vm47, %v525, 0.0
  %614 = vadd.xlane.f32.xlu0 %v613
  %v615 = vpop.xlane.xlu0 %614
  %v616 = vsel %vm47, %v526, 0.0
  %617 = vadd.xlane.f32.xlu0 %v616
  %v618 = vpop.xlane.xlu0 %617
  %v619 = vsel %vm47, %v527, 0.0
  %620 = vadd.xlane.f32.xlu0 %v619
  %v621 = vpop.xlane.xlu0 %620
  %v622 = vsel %vm47, %v528, 0.0
  %623 = vadd.xlane.f32.xlu0 %v622
  %v624 = vpop.xlane.xlu0 %623
  %v625 = vmul.f32 %v531, %v144
  %v626 = vmul.f32 %v534, %v144
  %v627 = vmul.f32 %v537, %v144
  %v628 = vmul.f32 %v540, %v144
  %v629 = vmul.f32 %v543, %v144
  %v630 = vmul.f32 %v546, %v144
  %v631 = vmul.f32 %v549, %v144
  %v632 = vmul.f32 %v552, %v144
  %v633 = vmul.f32 %v555, %v144
  %v634 = vmul.f32 %v558, %v144
  %v635 = vmul.f32 %v561, %v144
  %v636 = vmul.f32 %v564, %v144
  %v637 = vmul.f32 %v567, %v144
  %v638 = vmul.f32 %v570, %v144
  %v639 = vmul.f32 %v573, %v144
  %v640 = vmul.f32 %v576, %v144
  %v641 = vmul.f32 %v579, %v144
  %v642 = vmul.f32 %v582, %v144
  %v643 = vmul.f32 %v585, %v144
  %v644 = vmul.f32 %v588, %v144
  %v645 = vmul.f32 %v591, %v144
  %v646 = vmul.f32 %v594, %v144
  %v647 = vmul.f32 %v597, %v144
  %v648 = vmul.f32 %v600, %v144
  %v649 = vmul.f32 %v603, %v144
  %v650 = vmul.f32 %v606, %v144
  %v651 = vmul.f32 %v609, %v144
  %v652 = vmul.f32 %v612, %v144
  %v653 = vmul.f32 %v615, %v144
  %v654 = vmul.f32 %v618, %v144
  %v655 = vmul.f32 %v621, %v144
  %v656 = vmul.f32 %v624, %v144
  %v657 = vmul.f32 %v465, %v465
  %v658 = vmul.f32 %v466, %v466
  %v659 = vmul.f32 %v467, %v467
  %v660 = vmul.f32 %v468, %v468
  %v661 = vmul.f32 %v469, %v469
  %v662 = vmul.f32 %v470, %v470
  %v663 = vmul.f32 %v471, %v471
  %v664 = vmul.f32 %v472, %v472
  %v665 = vmul.f32 %v473, %v473
  %v666 = vmul.f32 %v474, %v474
  %v667 = vmul.f32 %v475, %v475
  %v668 = vmul.f32 %v476, %v476
  %v669 = vmul.f32 %v477, %v477
  %v670 = vmul.f32 %v478, %v478
  %v671 = vmul.f32 %v479, %v479
  %v672 = vmul.f32 %v480, %v480
  %v673 = vmul.f32 %v481, %v481
  %v674 = vmul.f32 %v482, %v482
  %v675 = vmul.f32 %v483, %v483
  %v676 = vmul.f32 %v484, %v484
  %v677 = vmul.f32 %v485, %v485
  %v678 = vmul.f32 %v486, %v486
  %v679 = vmul.f32 %v487, %v487
  %v680 = vmul.f32 %v488, %v488
  %v681 = vmul.f32 %v489, %v489
  %v682 = vmul.f32 %v490, %v490
  %v683 = vmul.f32 %v491, %v491
  %v684 = vmul.f32 %v492, %v492
  %v685 = vmul.f32 %v493, %v493
  %v686 = vmul.f32 %v494, %v494
  %v687 = vmul.f32 %v495, %v495
  %v688 = vmul.f32 %v496, %v496
  %721 = vrot.lane.b32.xlu0 %v657, 64
  %v722 = vpop.permute.xlu0 %721
  %723 = vrot.lane.b32.xlu0 %v658, 64
  %v724 = vpop.permute.xlu0 %723
  %725 = vrot.lane.b32.xlu0 %v659, 64
  %v726 = vpop.permute.xlu0 %725
  %727 = vrot.lane.b32.xlu0 %v660, 64
  %v728 = vpop.permute.xlu0 %727
  %729 = vrot.lane.b32.xlu0 %v661, 64
  %v730 = vpop.permute.xlu0 %729
  %731 = vrot.lane.b32.xlu0 %v662, 64
  %v732 = vpop.permute.xlu0 %731
  %733 = vrot.lane.b32.xlu0 %v663, 64
  %v734 = vpop.permute.xlu0 %733
  %735 = vrot.lane.b32.xlu0 %v664, 64
  %v736 = vpop.permute.xlu0 %735
  %737 = vrot.lane.b32.xlu0 %v665, 64
  %v738 = vpop.permute.xlu0 %737
  %739 = vrot.lane.b32.xlu0 %v666, 64
  %v740 = vpop.permute.xlu0 %739
  %741 = vrot.lane.b32.xlu0 %v667, 64
  %v742 = vpop.permute.xlu0 %741
  %743 = vrot.lane.b32.xlu0 %v668, 64
  %v744 = vpop.permute.xlu0 %743
  %745 = vrot.lane.b32.xlu0 %v669, 64
  %v746 = vpop.permute.xlu0 %745
  %747 = vrot.lane.b32.xlu0 %v670, 64
  %v748 = vpop.permute.xlu0 %747
  %749 = vrot.lane.b32.xlu0 %v671, 64
  %v750 = vpop.permute.xlu0 %749
  %751 = vrot.lane.b32.xlu0 %v672, 64
  %v752 = vpop.permute.xlu0 %751
  %753 = vrot.lane.b32.xlu0 %v673, 64
  %v754 = vpop.permute.xlu0 %753
  %755 = vrot.lane.b32.xlu0 %v674, 64
  %v756 = vpop.permute.xlu0 %755
  %757 = vrot.lane.b32.xlu0 %v675, 64
  %v758 = vpop.permute.xlu0 %757
  %759 = vrot.lane.b32.xlu0 %v676, 64
  %v760 = vpop.permute.xlu0 %759
  %761 = vrot.lane.b32.xlu0 %v677, 64
  %v762 = vpop.permute.xlu0 %761
  %763 = vrot.lane.b32.xlu0 %v678, 64
  %v764 = vpop.permute.xlu0 %763
  %765 = vrot.lane.b32.xlu0 %v679, 64
  %v766 = vpop.permute.xlu0 %765
  %767 = vrot.lane.b32.xlu0 %v680, 64
  %v768 = vpop.permute.xlu0 %767
  %769 = vrot.lane.b32.xlu0 %v681, 64
  %v770 = vpop.permute.xlu0 %769
  %771 = vrot.lane.b32.xlu0 %v682, 64
  %v772 = vpop.permute.xlu0 %771
  %773 = vrot.lane.b32.xlu0 %v683, 64
  %v774 = vpop.permute.xlu0 %773
  %775 = vrot.lane.b32.xlu0 %v684, 64
  %v776 = vpop.permute.xlu0 %775
  %777 = vrot.lane.b32.xlu0 %v685, 64
  %v778 = vpop.permute.xlu0 %777
  %779 = vrot.lane.b32.xlu0 %v686, 64
  %v780 = vpop.permute.xlu0 %779
  %781 = vrot.lane.b32.xlu0 %v687, 64
  %v782 = vpop.permute.xlu0 %781
  %783 = vrot.lane.b32.xlu0 %v688, 64
  %v784 = vpop.permute.xlu0 %783
  %v817 = vsel %vm47, %v722, 0.0
  %818 = vadd.xlane.f32.xlu0 %v817
  %v819 = vpop.xlane.xlu0 %818
  %v820 = vsel %vm47, %v724, 0.0
  %821 = vadd.xlane.f32.xlu0 %v820
  %v822 = vpop.xlane.xlu0 %821
  %v823 = vsel %vm47, %v726, 0.0
  %824 = vadd.xlane.f32.xlu0 %v823
  %v825 = vpop.xlane.xlu0 %824
  %v826 = vsel %vm47, %v728, 0.0
  %827 = vadd.xlane.f32.xlu0 %v826
  %v828 = vpop.xlane.xlu0 %827
  %v829 = vsel %vm47, %v730, 0.0
  %830 = vadd.xlane.f32.xlu0 %v829
  %v831 = vpop.xlane.xlu0 %830
  %v832 = vsel %vm47, %v732, 0.0
  %833 = vadd.xlane.f32.xlu0 %v832
  %v834 = vpop.xlane.xlu0 %833
  %v835 = vsel %vm47, %v734, 0.0
  %836 = vadd.xlane.f32.xlu0 %v835
  %v837 = vpop.xlane.xlu0 %836
  %v838 = vsel %vm47, %v736, 0.0
  %839 = vadd.xlane.f32.xlu0 %v838
  %v840 = vpop.xlane.xlu0 %839
  %v841 = vsel %vm47, %v738, 0.0
  %842 = vadd.xlane.f32.xlu0 %v841
  %v843 = vpop.xlane.xlu0 %842
  %v844 = vsel %vm47, %v740, 0.0
  %845 = vadd.xlane.f32.xlu0 %v844
  %v846 = vpop.xlane.xlu0 %845
  %v847 = vsel %vm47, %v742, 0.0
  %848 = vadd.xlane.f32.xlu0 %v847
  %v849 = vpop.xlane.xlu0 %848
  %v850 = vsel %vm47, %v744, 0.0
  %851 = vadd.xlane.f32.xlu0 %v850
  %v852 = vpop.xlane.xlu0 %851
  %v853 = vsel %vm47, %v746, 0.0
  %854 = vadd.xlane.f32.xlu0 %v853
  %v855 = vpop.xlane.xlu0 %854
  %v856 = vsel %vm47, %v748, 0.0
  %857 = vadd.xlane.f32.xlu0 %v856
  %v858 = vpop.xlane.xlu0 %857
  %v859 = vsel %vm47, %v750, 0.0
  %860 = vadd.xlane.f32.xlu0 %v859
  %v861 = vpop.xlane.xlu0 %860
  %v862 = vsel %vm47, %v752, 0.0
  %863 = vadd.xlane.f32.xlu0 %v862
  %v864 = vpop.xlane.xlu0 %863
  %v865 = vsel %vm47, %v754, 0.0
  %866 = vadd.xlane.f32.xlu0 %v865
  %v867 = vpop.xlane.xlu0 %866
  %v868 = vsel %vm47, %v756, 0.0
  %869 = vadd.xlane.f32.xlu0 %v868
  %v870 = vpop.xlane.xlu0 %869
  %v871 = vsel %vm47, %v758, 0.0
  %872 = vadd.xlane.f32.xlu0 %v871
  %v873 = vpop.xlane.xlu0 %872
  %v874 = vsel %vm47, %v760, 0.0
  %875 = vadd.xlane.f32.xlu0 %v874
  %v876 = vpop.xlane.xlu0 %875
  %v877 = vsel %vm47, %v762, 0.0
  %878 = vadd.xlane.f32.xlu0 %v877
  %v879 = vpop.xlane.xlu0 %878
  %v880 = vsel %vm47, %v764, 0.0
  %881 = vadd.xlane.f32.xlu0 %v880
  %v882 = vpop.xlane.xlu0 %881
  %v883 = vsel %vm47, %v766, 0.0
  %884 = vadd.xlane.f32.xlu0 %v883
  %v885 = vpop.xlane.xlu0 %884
  %v886 = vsel %vm47, %v768, 0.0
  %887 = vadd.xlane.f32.xlu0 %v886
  %v888 = vpop.xlane.xlu0 %887
  %v889 = vsel %vm47, %v770, 0.0
  %890 = vadd.xlane.f32.xlu0 %v889
  %v891 = vpop.xlane.xlu0 %890
  %v892 = vsel %vm47, %v772, 0.0
  %893 = vadd.xlane.f32.xlu0 %v892
  %v894 = vpop.xlane.xlu0 %893
  %v895 = vsel %vm47, %v774, 0.0
  %896 = vadd.xlane.f32.xlu0 %v895
  %v897 = vpop.xlane.xlu0 %896
  %v898 = vsel %vm47, %v776, 0.0
  %899 = vadd.xlane.f32.xlu0 %v898
  %v900 = vpop.xlane.xlu0 %899
  %v901 = vsel %vm47, %v778, 0.0
  %902 = vadd.xlane.f32.xlu0 %v901
  %v903 = vpop.xlane.xlu0 %902
  %v904 = vsel %vm47, %v780, 0.0
  %905 = vadd.xlane.f32.xlu0 %v904
  %v906 = vpop.xlane.xlu0 %905
  %v907 = vsel %vm47, %v782, 0.0
  %908 = vadd.xlane.f32.xlu0 %v907
  %v909 = vpop.xlane.xlu0 %908
  %v910 = vsel %vm47, %v784, 0.0
  %911 = vadd.xlane.f32.xlu0 %v910
  %v912 = vpop.xlane.xlu0 %911
  %v913 = vmul.f32 %v819, %v144
  %v914 = vmul.f32 %v822, %v144
  %v915 = vmul.f32 %v825, %v144
  %v916 = vmul.f32 %v828, %v144
  %v917 = vmul.f32 %v831, %v144
  %v918 = vmul.f32 %v834, %v144
  %v919 = vmul.f32 %v837, %v144
  %v920 = vmul.f32 %v840, %v144
  %v921 = vmul.f32 %v843, %v144
  %v922 = vmul.f32 %v846, %v144
  %v923 = vmul.f32 %v849, %v144
  %v924 = vmul.f32 %v852, %v144
  %v925 = vmul.f32 %v855, %v144
  %v926 = vmul.f32 %v858, %v144
  %v927 = vmul.f32 %v861, %v144
  %v928 = vmul.f32 %v864, %v144
  %v929 = vmul.f32 %v867, %v144
  %v930 = vmul.f32 %v870, %v144
  %v931 = vmul.f32 %v873, %v144
  %v932 = vmul.f32 %v876, %v144
  %v933 = vmul.f32 %v879, %v144
  %v934 = vmul.f32 %v882, %v144
  %v935 = vmul.f32 %v885, %v144
  %v936 = vmul.f32 %v888, %v144
  %v937 = vmul.f32 %v891, %v144
  %v938 = vmul.f32 %v894, %v144
  %v939 = vmul.f32 %v897, %v144
  %v940 = vmul.f32 %v900, %v144
  %v941 = vmul.f32 %v903, %v144
  %v942 = vmul.f32 %v906, %v144
  %v943 = vmul.f32 %v909, %v144
  %v944 = vmul.f32 %v912, %v144
  %v945 = vadd.f32 %v625, 1e-05
  %v946 = vadd.f32 %v626, 1e-05
  %v947 = vadd.f32 %v627, 1e-05
  %v948 = vadd.f32 %v628, 1e-05
  %v949 = vadd.f32 %v629, 1e-05
  %v950 = vadd.f32 %v630, 1e-05
  %v951 = vadd.f32 %v631, 1e-05
  %v952 = vadd.f32 %v632, 1e-05
  %v953 = vadd.f32 %v633, 1e-05
  %v954 = vadd.f32 %v634, 1e-05
  %v955 = vadd.f32 %v635, 1e-05
  %v956 = vadd.f32 %v636, 1e-05
  %v957 = vadd.f32 %v637, 1e-05
  %v958 = vadd.f32 %v638, 1e-05
  %v959 = vadd.f32 %v639, 1e-05
  %v960 = vadd.f32 %v640, 1e-05
  %v961 = vadd.f32 %v641, 1e-05
  %v962 = vadd.f32 %v642, 1e-05
  %v963 = vadd.f32 %v643, 1e-05
  %v964 = vadd.f32 %v644, 1e-05
  %v965 = vadd.f32 %v645, 1e-05
  %v966 = vadd.f32 %v646, 1e-05
  %v967 = vadd.f32 %v647, 1e-05
  %v968 = vadd.f32 %v648, 1e-05
  %v969 = vadd.f32 %v649, 1e-05
  %v970 = vadd.f32 %v650, 1e-05
  %v971 = vadd.f32 %v651, 1e-05
  %v972 = vadd.f32 %v652, 1e-05
  %v973 = vadd.f32 %v653, 1e-05
  %v974 = vadd.f32 %v654, 1e-05
  %v975 = vadd.f32 %v655, 1e-05
  %v976 = vadd.f32 %v656, 1e-05
  %v977 = vrsqrt.pop %v945
  %v978 = vrsqrt.pop %v946
  %v979 = vrsqrt.pop %v947
  %v980 = vrsqrt.pop %v948
  %v981 = vrsqrt.pop %v949
  %v982 = vrsqrt.pop %v950
  %v983 = vrsqrt.pop %v951
  %v984 = vrsqrt.pop %v952
  %v985 = vrsqrt.pop %v953
  %v986 = vrsqrt.pop %v954
  %v987 = vrsqrt.pop %v955
  %v988 = vrsqrt.pop %v956
  %v989 = vrsqrt.pop %v957
  %v990 = vrsqrt.pop %v958
  %v991 = vrsqrt.pop %v959
  %v992 = vrsqrt.pop %v960
  %v993 = vrsqrt.pop %v961
  %v994 = vrsqrt.pop %v962
  %v995 = vrsqrt.pop %v963
  %v996 = vrsqrt.pop %v964
  %v997 = vrsqrt.pop %v965
  %v998 = vrsqrt.pop %v966
  %v999 = vrsqrt.pop %v967
  %v1000 = vrsqrt.pop %v968
  %v1001 = vrsqrt.pop %v969
  %v1002 = vrsqrt.pop %v970
  %v1003 = vrsqrt.pop %v971
  %v1004 = vrsqrt.pop %v972
  %v1005 = vrsqrt.pop %v973
  %v1006 = vrsqrt.pop %v974
  %v1007 = vrsqrt.pop %v975
  %v1008 = vrsqrt.pop %v976
  %v1009 = vmul.f32 %v433, %v977
  %v1010 = vmul.f32 %v434, %v978
  %v1011 = vmul.f32 %v435, %v979
  %v1012 = vmul.f32 %v436, %v980
  %v1013 = vmul.f32 %v437, %v981
  %v1014 = vmul.f32 %v438, %v982
  %v1015 = vmul.f32 %v439, %v983
  %v1016 = vmul.f32 %v440, %v984
  %v1017 = vmul.f32 %v441, %v985
  %v1018 = vmul.f32 %v442, %v986
  %v1019 = vmul.f32 %v443, %v987
  %v1020 = vmul.f32 %v444, %v988
  %v1021 = vmul.f32 %v445, %v989
  %v1022 = vmul.f32 %v446, %v990
  %v1023 = vmul.f32 %v447, %v991
  %v1024 = vmul.f32 %v448, %v992
  %v1025 = vmul.f32 %v449, %v993
  %v1026 = vmul.f32 %v450, %v994
  %v1027 = vmul.f32 %v451, %v995
  %v1028 = vmul.f32 %v452, %v996
  %v1029 = vmul.f32 %v453, %v997
  %v1030 = vmul.f32 %v454, %v998
  %v1031 = vmul.f32 %v455, %v999
  %v1032 = vmul.f32 %v456, %v1000
  %v1033 = vmul.f32 %v457, %v1001
  %v1034 = vmul.f32 %v458, %v1002
  %v1035 = vmul.f32 %v459, %v1003
  %v1036 = vmul.f32 %v460, %v1004
  %v1037 = vmul.f32 %v461, %v1005
  %v1038 = vmul.f32 %v462, %v1006
  %v1039 = vmul.f32 %v463, %v1007
  %v1040 = vmul.f32 %v464, %v1008
  %v1041 = vadd.f32 %v913, 1e-05
  %v1042 = vadd.f32 %v914, 1e-05
  %v1043 = vadd.f32 %v915, 1e-05
  %v1044 = vadd.f32 %v916, 1e-05
  %v1045 = vadd.f32 %v917, 1e-05
  %v1046 = vadd.f32 %v918, 1e-05
  %v1047 = vadd.f32 %v919, 1e-05
  %v1048 = vadd.f32 %v920, 1e-05
  %v1049 = vadd.f32 %v921, 1e-05
  %v1050 = vadd.f32 %v922, 1e-05
  %v1051 = vadd.f32 %v923, 1e-05
  %v1052 = vadd.f32 %v924, 1e-05
  %v1053 = vadd.f32 %v925, 1e-05
  %v1054 = vadd.f32 %v926, 1e-05
  %v1055 = vadd.f32 %v927, 1e-05
  %v1056 = vadd.f32 %v928, 1e-05
  %v1057 = vadd.f32 %v929, 1e-05
  %v1058 = vadd.f32 %v930, 1e-05
  %v1059 = vadd.f32 %v931, 1e-05
  %v1060 = vadd.f32 %v932, 1e-05
  %v1061 = vadd.f32 %v933, 1e-05
  %v1062 = vadd.f32 %v934, 1e-05
  %v1063 = vadd.f32 %v935, 1e-05
  %v1064 = vadd.f32 %v936, 1e-05
  %v1065 = vadd.f32 %v937, 1e-05
  %v1066 = vadd.f32 %v938, 1e-05
  %v1067 = vadd.f32 %v939, 1e-05
  %v1068 = vadd.f32 %v940, 1e-05
  %v1069 = vadd.f32 %v941, 1e-05
  %v1070 = vadd.f32 %v942, 1e-05
  %v1071 = vadd.f32 %v943, 1e-05
  %v1072 = vadd.f32 %v944, 1e-05
  %v1073 = vrsqrt.pop %v1041
  %v1074 = vrsqrt.pop %v1042
  %v1075 = vrsqrt.pop %v1043
  %v1076 = vrsqrt.pop %v1044
  %v1077 = vrsqrt.pop %v1045
  %v1078 = vrsqrt.pop %v1046
  %v1079 = vrsqrt.pop %v1047
  %v1080 = vrsqrt.pop %v1048
  %v1081 = vrsqrt.pop %v1049
  %v1082 = vrsqrt.pop %v1050
  %v1083 = vrsqrt.pop %v1051
  %v1084 = vrsqrt.pop %v1052
  %v1085 = vrsqrt.pop %v1053
  %v1086 = vrsqrt.pop %v1054
  %v1087 = vrsqrt.pop %v1055
  %v1088 = vrsqrt.pop %v1056
  %v1089 = vrsqrt.pop %v1057
  %v1090 = vrsqrt.pop %v1058
  %v1091 = vrsqrt.pop %v1059
  %v1092 = vrsqrt.pop %v1060
  %v1093 = vrsqrt.pop %v1061
  %v1094 = vrsqrt.pop %v1062
  %v1095 = vrsqrt.pop %v1063
  %v1096 = vrsqrt.pop %v1064
  %v1097 = vrsqrt.pop %v1065
  %v1098 = vrsqrt.pop %v1066
  %v1099 = vrsqrt.pop %v1067
  %v1100 = vrsqrt.pop %v1068
  %v1101 = vrsqrt.pop %v1069
  %v1102 = vrsqrt.pop %v1070
  %v1103 = vrsqrt.pop %v1071
  %v1104 = vrsqrt.pop %v1072
  %v1105 = vmul.f32 %v465, %v1073
  %v1106 = vmul.f32 %v466, %v1074
  %v1107 = vmul.f32 %v467, %v1075
  %v1108 = vmul.f32 %v468, %v1076
  %v1109 = vmul.f32 %v469, %v1077
  %v1110 = vmul.f32 %v470, %v1078
  %v1111 = vmul.f32 %v471, %v1079
  %v1112 = vmul.f32 %v472, %v1080
  %v1113 = vmul.f32 %v473, %v1081
  %v1114 = vmul.f32 %v474, %v1082
  %v1115 = vmul.f32 %v475, %v1083
  %v1116 = vmul.f32 %v476, %v1084
  %v1117 = vmul.f32 %v477, %v1085
  %v1118 = vmul.f32 %v478, %v1086
  %v1119 = vmul.f32 %v479, %v1087
  %v1120 = vmul.f32 %v480, %v1088
  %v1121 = vmul.f32 %v481, %v1089
  %v1122 = vmul.f32 %v482, %v1090
  %v1123 = vmul.f32 %v483, %v1091
  %v1124 = vmul.f32 %v484, %v1092
  %v1125 = vmul.f32 %v485, %v1093
  %v1126 = vmul.f32 %v486, %v1094
  %v1127 = vmul.f32 %v487, %v1095
  %v1128 = vmul.f32 %v488, %v1096
  %v1129 = vmul.f32 %v489, %v1097
  %v1130 = vmul.f32 %v490, %v1098
  %v1131 = vmul.f32 %v491, %v1099
  %v1132 = vmul.f32 %v492, %v1100
  %v1133 = vmul.f32 %v493, %v1101
  %v1134 = vmul.f32 %v494, %v1102
  %v1135 = vmul.f32 %v495, %v1103
  %v1136 = vmul.f32 %v496, %v1104
  %v1137 = vsel %vm47, %v1009, %v1105
  %v1138 = vsel %vm47, %v1010, %v1106
  %v1139 = vsel %vm47, %v1011, %v1107
  %v1140 = vsel %vm47, %v1012, %v1108
  %v1141 = vsel %vm47, %v1013, %v1109
  %v1142 = vsel %vm47, %v1014, %v1110
  %v1143 = vsel %vm47, %v1015, %v1111
  %v1144 = vsel %vm47, %v1016, %v1112
  %v1145 = vsel %vm47, %v1017, %v1113
  %v1146 = vsel %vm47, %v1018, %v1114
  %v1147 = vsel %vm47, %v1019, %v1115
  %v1148 = vsel %vm47, %v1020, %v1116
  %v1149 = vsel %vm47, %v1021, %v1117
  %v1150 = vsel %vm47, %v1022, %v1118
  %v1151 = vsel %vm47, %v1023, %v1119
  %v1152 = vsel %vm47, %v1024, %v1120
  %v1153 = vsel %vm47, %v1025, %v1121
  %v1154 = vsel %vm47, %v1026, %v1122
  %v1155 = vsel %vm47, %v1027, %v1123
  %v1156 = vsel %vm47, %v1028, %v1124
  %v1157 = vsel %vm47, %v1029, %v1125
  %v1158 = vsel %vm47, %v1030, %v1126
  %v1159 = vsel %vm47, %v1031, %v1127
  %v1160 = vsel %vm47, %v1032, %v1128
  %v1161 = vsel %vm47, %v1033, %v1129
  %v1162 = vsel %vm47, %v1034, %v1130
  %v1163 = vsel %vm47, %v1035, %v1131
  %v1164 = vsel %vm47, %v1036, %v1132
  %v1165 = vsel %vm47, %v1037, %v1133
  %v1166 = vsel %vm47, %v1038, %v1134
  %v1167 = vsel %vm47, %v1039, %v1135
  %v1168 = vsel %vm47, %v1040, %v1136
  %v1169 = vpack.c.bf16 %v1138, %v1137
  %v1170 = vpack.c.bf16 %v1140, %v1139
  %v1171 = vpack.c.bf16 %v1142, %v1141
  %v1172 = vpack.c.bf16 %v1144, %v1143
  %v1173 = vpack.c.bf16 %v1146, %v1145
  %v1174 = vpack.c.bf16 %v1148, %v1147
  %v1175 = vpack.c.bf16 %v1150, %v1149
  %v1176 = vpack.c.bf16 %v1152, %v1151
  %v1177 = vpack.c.bf16 %v1154, %v1153
  %v1178 = vpack.c.bf16 %v1156, %v1155
  %v1179 = vpack.c.bf16 %v1158, %v1157
  %v1180 = vpack.c.bf16 %v1160, %v1159
  %v1181 = vpack.c.bf16 %v1162, %v1161
  %v1182 = vpack.c.bf16 %v1164, %v1163
  %v1183 = vpack.c.bf16 %v1166, %v1165
  %v1184 = vpack.c.bf16 %v1168, %v1167
  %v1185 = vld [vmem:[%s1] sm:$0xff]
  %v1186 = vld [vmem:[%s1 + $0x8] sm:$0xff]
  %v1187 = vld [vmem:[%s1 + $0x10] sm:$0xff]
  %v1188 = vld [vmem:[%s1 + $0x18] sm:$0xff]
  %v1189 = vld [vmem:[%s1 + $0x20] sm:$0xff]
  %v1190 = vld [vmem:[%s1 + $0x28] sm:$0xff]
  %v1191 = vld [vmem:[%s1 + $0x30] sm:$0xff]
  %v1192 = vld [vmem:[%s1 + $0x38] sm:$0xff]
  %v1193 = vld [vmem:[%s1 + $0x40] sm:$0xff]
  %v1194 = vld [vmem:[%s1 + $0x48] sm:$0xff]
  %v1195 = vld [vmem:[%s1 + $0x50] sm:$0xff]
  %v1196 = vld [vmem:[%s1 + $0x58] sm:$0xff]
  %v1197 = vld [vmem:[%s1 + $0x60] sm:$0xff]
  %v1198 = vld [vmem:[%s1 + $0x68] sm:$0xff]
  %v1199 = vld [vmem:[%s1 + $0x70] sm:$0xff]
  %v1200 = vld [vmem:[%s1 + $0x78] sm:$0xff]
  %v1201 = vld [vmem:[%s2] sm:$0x3]
  %v1203 = vlaneseq
  %v1204 = vshrl.u32 %v1203, 7
  %v1205 = vsub.s32 0, %v1204
  %v1206 = vrot.slane %v1201, %v1205
  %v1207 = vlaneseq
  %v1208 = vshrl.u32 %v1207, 7
  %v1209 = vsub.s32 1, %v1208
  %v1210 = vrot.slane %v1201, %v1209
  %v1229 = vunpack.c.l.b16 %v1185
  %v1230 = vunpack.c.h.b16 %v1185
  %v1231 = vunpack.c.l.b16 %v1186
  %v1232 = vunpack.c.h.b16 %v1186
  %v1233 = vunpack.c.l.b16 %v1187
  %v1234 = vunpack.c.h.b16 %v1187
  %v1235 = vunpack.c.l.b16 %v1188
  %v1236 = vunpack.c.h.b16 %v1188
  %v1237 = vunpack.c.l.b16 %v1189
  %v1238 = vunpack.c.h.b16 %v1189
  %v1239 = vunpack.c.l.b16 %v1190
  %v1240 = vunpack.c.h.b16 %v1190
  %v1241 = vunpack.c.l.b16 %v1191
  %v1242 = vunpack.c.h.b16 %v1191
  %v1243 = vunpack.c.l.b16 %v1192
  %v1244 = vunpack.c.h.b16 %v1192
  %v1245 = vunpack.c.l.b16 %v1193
  %v1246 = vunpack.c.h.b16 %v1193
  %v1247 = vunpack.c.l.b16 %v1194
  %v1248 = vunpack.c.h.b16 %v1194
  %v1249 = vunpack.c.l.b16 %v1195
  %v1250 = vunpack.c.h.b16 %v1195
  %v1251 = vunpack.c.l.b16 %v1196
  %v1252 = vunpack.c.h.b16 %v1196
  %v1253 = vunpack.c.l.b16 %v1197
  %v1254 = vunpack.c.h.b16 %v1197
  %v1255 = vunpack.c.l.b16 %v1198
  %v1256 = vunpack.c.h.b16 %v1198
  %v1257 = vunpack.c.l.b16 %v1199
  %v1258 = vunpack.c.h.b16 %v1199
  %v1259 = vunpack.c.l.b16 %v1200
  %v1260 = vunpack.c.h.b16 %v1200
  %v1261 = vpack.c.b16 %v1231, %v1229
  %v1262 = vpack.c.b16 %v1232, %v1230
  %v1263 = vpack.c.b16 %v1235, %v1233
  %v1264 = vpack.c.b16 %v1236, %v1234
  %v1265 = vpack.c.b16 %v1239, %v1237
  %v1266 = vpack.c.b16 %v1240, %v1238
  %v1267 = vpack.c.b16 %v1243, %v1241
  %v1268 = vpack.c.b16 %v1244, %v1242
  %v1269 = vpack.c.b16 %v1247, %v1245
  %v1270 = vpack.c.b16 %v1248, %v1246
  %v1271 = vpack.c.b16 %v1251, %v1249
  %v1272 = vpack.c.b16 %v1252, %v1250
  %v1273 = vpack.c.b16 %v1255, %v1253
  %v1274 = vpack.c.b16 %v1256, %v1254
  %v1275 = vpack.c.b16 %v1259, %v1257
  %v1276 = vpack.c.b16 %v1260, %v1258
  %1293 = vmatprep.subr.bf16.mxu0 %v1262
  %1294 = vmatpush1.bf16.msra.mxu0 %v1261
  %1295 = vmatprep.subr.bf16.mxu0 %v1264
  %1296 = vmatpush1.bf16.msra.mxu0 %v1263
  %1297 = vmatprep.subr.bf16.mxu0 %v1266
  %1298 = vmatpush1.bf16.msra.mxu0 %v1265
  %1299 = vmatprep.subr.bf16.mxu0 %v1268
  %1300 = vmatpush1.bf16.msra.mxu0 %v1267
  %1301 = vmatprep.subr.bf16.mxu0 %v1270
  %1302 = vmatpush1.bf16.msra.mxu0 %v1269
  %1303 = vmatprep.subr.bf16.mxu0 %v1272
  %1304 = vmatpush1.bf16.msra.mxu0 %v1271
  %1305 = vmatprep.subr.bf16.mxu0 %v1274
  %1306 = vmatpush1.bf16.msra.mxu0 %v1273
  %1307 = vmatprep.subr.bf16.mxu0 %v1276
  %1308 = vmatpush1.bf16.msra.mxu0 %v1275
  %1309 = vmatprep.subr.bf16.mxu0 0
  %1310 = vmatpush1.bf16.msra.mxu0 0
  %1311 = vmatprep.subr.bf16.mxu0 0
  %1312 = vmatpush1.bf16.msra.mxu0 0
  %1313 = vmatprep.subr.bf16.mxu0 0
  %1314 = vmatpush1.bf16.msra.mxu0 0
  %1315 = vmatprep.subr.bf16.mxu0 0
  %1316 = vmatpush1.bf16.msra.mxu0 0
  %1317 = vmatprep.subr.bf16.mxu0 0
  %1318 = vmatpush1.bf16.msra.mxu0 0
  %1319 = vmatprep.subr.bf16.mxu0 0
  %1320 = vmatpush1.bf16.msra.mxu0 0
  %1321 = vmatprep.subr.bf16.mxu0 0
  %1322 = vmatpush1.bf16.msra.mxu0 0
  %1323 = vmatprep.subr.bf16.mxu0 0
  %1324 = vmatpush1.bf16.msra.mxu0 0
  %1325 = vmatprep.mubr.bf16.mxu0 0
  %1326 = vmatmul.mubr.bf16.gmra.mrb[0].mxu0 %v1169
  %v1327 = vpop.f32.mrb[0].mxu0
  %v1328 = vadd.f32 %v1206, %v1327
  %v1329 = vpop.f32.mrb[0].mxu0
  %v1330 = vadd.f32 %v1210, %v1329
  %v1331 = vpop.f32.mrb[0].mxu0
  %v1332 = vadd.f32 %v1206, %v1331
  %v1333 = vpop.f32.mrb[0].mxu0
  %v1334 = vadd.f32 %v1210, %v1333
  %1335 = vmatprep.mubr.bf16.mxu0 0
  %1336 = vmatmul.mubr.bf16.gmra.mrb[0].mxu0 %v1170
  %v1337 = vpop.f32.mrb[0].mxu0
  %v1338 = vadd.f32 %v1206, %v1337
  %v1339 = vpop.f32.mrb[0].mxu0
  %v1340 = vadd.f32 %v1210, %v1339
  %v1341 = vpop.f32.mrb[0].mxu0
  %v1342 = vadd.f32 %v1206, %v1341
  %v1343 = vpop.f32.mrb[0].mxu0
  %v1344 = vadd.f32 %v1210, %v1343
  %1345 = vmatprep.mubr.bf16.mxu0 0
  %1346 = vmatmul.mubr.bf16.gmra.mrb[0].mxu0 %v1171
  %v1347 = vpop.f32.mrb[0].mxu0
  %v1348 = vadd.f32 %v1206, %v1347
  %v1349 = vpop.f32.mrb[0].mxu0
  %v1350 = vadd.f32 %v1210, %v1349
  %v1351 = vpop.f32.mrb[0].mxu0
  %v1352 = vadd.f32 %v1206, %v1351
  %v1353 = vpop.f32.mrb[0].mxu0
  %v1354 = vadd.f32 %v1210, %v1353
  %1355 = vmatprep.mubr.bf16.mxu0 0
  %1356 = vmatmul.mubr.bf16.gmra.mrb[0].mxu0 %v1172
  %v1357 = vpop.f32.mrb[0].mxu0
  %v1358 = vadd.f32 %v1206, %v1357
  %v1359 = vpop.f32.mrb[0].mxu0
  %v1360 = vadd.f32 %v1210, %v1359
  %v1361 = vpop.f32.mrb[0].mxu0
  %v1362 = vadd.f32 %v1206, %v1361
  %v1363 = vpop.f32.mrb[0].mxu0
  %v1364 = vadd.f32 %v1210, %v1363
  %1365 = vmatprep.mubr.bf16.mxu0 0
  %1366 = vmatmul.mubr.bf16.gmra.mrb[0].mxu0 %v1173
  %v1367 = vpop.f32.mrb[0].mxu0
  %v1368 = vadd.f32 %v1206, %v1367
  %v1369 = vpop.f32.mrb[0].mxu0
  %v1370 = vadd.f32 %v1210, %v1369
  %v1371 = vpop.f32.mrb[0].mxu0
  %v1372 = vadd.f32 %v1206, %v1371
  %v1373 = vpop.f32.mrb[0].mxu0
  %v1374 = vadd.f32 %v1210, %v1373
  %1375 = vmatprep.mubr.bf16.mxu0 0
  %1376 = vmatmul.mubr.bf16.gmra.mrb[0].mxu0 %v1174
  %v1377 = vpop.f32.mrb[0].mxu0
  %v1378 = vadd.f32 %v1206, %v1377
  %v1379 = vpop.f32.mrb[0].mxu0
  %v1380 = vadd.f32 %v1210, %v1379
  %v1381 = vpop.f32.mrb[0].mxu0
  %v1382 = vadd.f32 %v1206, %v1381
  %v1383 = vpop.f32.mrb[0].mxu0
  %v1384 = vadd.f32 %v1210, %v1383
  %1385 = vmatprep.mubr.bf16.mxu0 0
  %1386 = vmatmul.mubr.bf16.gmra.mrb[0].mxu0 %v1175
  %v1387 = vpop.f32.mrb[0].mxu0
  %v1388 = vadd.f32 %v1206, %v1387
  %v1389 = vpop.f32.mrb[0].mxu0
  %v1390 = vadd.f32 %v1210, %v1389
  %v1391 = vpop.f32.mrb[0].mxu0
  %v1392 = vadd.f32 %v1206, %v1391
  %v1393 = vpop.f32.mrb[0].mxu0
  %v1394 = vadd.f32 %v1210, %v1393
  %1395 = vmatprep.mubr.bf16.mxu0 0
  %1396 = vmatmul.mubr.bf16.gmra.mrb[0].mxu0 %v1176
  %v1397 = vpop.f32.mrb[0].mxu0
  %v1398 = vadd.f32 %v1206, %v1397
  %v1399 = vpop.f32.mrb[0].mxu0
  %v1400 = vadd.f32 %v1210, %v1399
  %v1401 = vpop.f32.mrb[0].mxu0
  %v1402 = vadd.f32 %v1206, %v1401
  %v1403 = vpop.f32.mrb[0].mxu0
  %v1404 = vadd.f32 %v1210, %v1403
  %1405 = vmatprep.mubr.bf16.mxu0 0
  %1406 = vmatmul.mubr.bf16.gmra.mrb[0].mxu0 %v1177
  %v1407 = vpop.f32.mrb[0].mxu0
  %v1408 = vadd.f32 %v1206, %v1407
  %v1409 = vpop.f32.mrb[0].mxu0
  %v1410 = vadd.f32 %v1210, %v1409
  %v1411 = vpop.f32.mrb[0].mxu0
  %v1412 = vadd.f32 %v1206, %v1411
  %v1413 = vpop.f32.mrb[0].mxu0
  %v1414 = vadd.f32 %v1210, %v1413
  %1415 = vmatprep.mubr.bf16.mxu0 0
  %1416 = vmatmul.mubr.bf16.gmra.mrb[0].mxu0 %v1178
  %v1417 = vpop.f32.mrb[0].mxu0
  %v1418 = vadd.f32 %v1206, %v1417
  %v1419 = vpop.f32.mrb[0].mxu0
  %v1420 = vadd.f32 %v1210, %v1419
  %v1421 = vpop.f32.mrb[0].mxu0
  %v1422 = vadd.f32 %v1206, %v1421
  %v1423 = vpop.f32.mrb[0].mxu0
  %v1424 = vadd.f32 %v1210, %v1423
  %1425 = vmatprep.mubr.bf16.mxu0 0
  %1426 = vmatmul.mubr.bf16.gmra.mrb[0].mxu0 %v1179
  %v1427 = vpop.f32.mrb[0].mxu0
  %v1428 = vadd.f32 %v1206, %v1427
  %v1429 = vpop.f32.mrb[0].mxu0
  %v1430 = vadd.f32 %v1210, %v1429
  %v1431 = vpop.f32.mrb[0].mxu0
  %v1432 = vadd.f32 %v1206, %v1431
  %v1433 = vpop.f32.mrb[0].mxu0
  %v1434 = vadd.f32 %v1210, %v1433
  %1435 = vmatprep.mubr.bf16.mxu0 0
  %1436 = vmatmul.mubr.bf16.gmra.mrb[0].mxu0 %v1180
  %v1437 = vpop.f32.mrb[0].mxu0
  %v1438 = vadd.f32 %v1206, %v1437
  %v1439 = vpop.f32.mrb[0].mxu0
  %v1440 = vadd.f32 %v1210, %v1439
  %v1441 = vpop.f32.mrb[0].mxu0
  %v1442 = vadd.f32 %v1206, %v1441
  %v1443 = vpop.f32.mrb[0].mxu0
  %v1444 = vadd.f32 %v1210, %v1443
  %1445 = vmatprep.mubr.bf16.mxu0 0
  %1446 = vmatmul.mubr.bf16.gmra.mrb[0].mxu0 %v1181
  %v1447 = vpop.f32.mrb[0].mxu0
  %v1448 = vadd.f32 %v1206, %v1447
  %v1449 = vpop.f32.mrb[0].mxu0
  %v1450 = vadd.f32 %v1210, %v1449
  %v1451 = vpop.f32.mrb[0].mxu0
  %v1452 = vadd.f32 %v1206, %v1451
  %v1453 = vpop.f32.mrb[0].mxu0
  %v1454 = vadd.f32 %v1210, %v1453
  %1455 = vmatprep.mubr.bf16.mxu0 0
  %1456 = vmatmul.mubr.bf16.gmra.mrb[0].mxu0 %v1182
  %v1457 = vpop.f32.mrb[0].mxu0
  %v1458 = vadd.f32 %v1206, %v1457
  %v1459 = vpop.f32.mrb[0].mxu0
  %v1460 = vadd.f32 %v1210, %v1459
  %v1461 = vpop.f32.mrb[0].mxu0
  %v1462 = vadd.f32 %v1206, %v1461
  %v1463 = vpop.f32.mrb[0].mxu0
  %v1464 = vadd.f32 %v1210, %v1463
  %1465 = vmatprep.mubr.bf16.mxu0 0
  %1466 = vmatmul.mubr.bf16.gmra.mrb[0].mxu0 %v1183
  %v1467 = vpop.f32.mrb[0].mxu0
  %v1468 = vadd.f32 %v1206, %v1467
  %v1469 = vpop.f32.mrb[0].mxu0
  %v1470 = vadd.f32 %v1210, %v1469
  %v1471 = vpop.f32.mrb[0].mxu0
  %v1472 = vadd.f32 %v1206, %v1471
  %v1473 = vpop.f32.mrb[0].mxu0
  %v1474 = vadd.f32 %v1210, %v1473
  %1475 = vmatprep.mubr.bf16.mxu0 0
  %1476 = vmatmul.mubr.bf16.gmra.mrb[0].mxu0 %v1184
  %v1477 = vpop.f32.mrb[0].mxu0
  %v1478 = vadd.f32 %v1206, %v1477
  %v1479 = vpop.f32.mrb[0].mxu0
  %v1480 = vadd.f32 %v1210, %v1479
  %v1481 = vpop.f32.mrb[0].mxu0
  %v1482 = vadd.f32 %v1206, %v1481
  %v1483 = vpop.f32.mrb[0].mxu0
  %v1484 = vadd.f32 %v1210, %v1483
  %1485 = vdwg.mxu0
  %1486 = vst [vmem:[%s3] sm:$0xff] %v1328
  %1487 = vst [vmem:[%s3 + $0x10] sm:$0xff] %v1332
  %1488 = vst [vmem:[%s3 + $0x20] sm:$0xff] %v1338
  %1489 = vst [vmem:[%s3 + $0x30] sm:$0xff] %v1342
  %1490 = vst [vmem:[%s3 + $0x40] sm:$0xff] %v1348
  %1491 = vst [vmem:[%s3 + $0x50] sm:$0xff] %v1352
  %1492 = vst [vmem:[%s3 + $0x60] sm:$0xff] %v1358
  %1493 = vst [vmem:[%s3 + $0x70] sm:$0xff] %v1362
  %1494 = vst [vmem:[%s3 + $0x80] sm:$0xff] %v1368
  %1495 = vst [vmem:[%s3 + $0x90] sm:$0xff] %v1372
  %1496 = vst [vmem:[%s3 + $0xa0] sm:$0xff] %v1378
  %1497 = vst [vmem:[%s3 + $0xb0] sm:$0xff] %v1382
  %1498 = vst [vmem:[%s3 + $0xc0] sm:$0xff] %v1388
  %1499 = vst [vmem:[%s3 + $0xd0] sm:$0xff] %v1392
  %1500 = vst [vmem:[%s3 + $0xe0] sm:$0xff] %v1398
  %1501 = vst [vmem:[%s3 + $0xf0] sm:$0xff] %v1402
  %1502 = vst [vmem:[%s3 + $0x100] sm:$0xff] %v1408
  %1503 = vst [vmem:[%s3 + $0x110] sm:$0xff] %v1412
  %1504 = vst [vmem:[%s3 + $0x120] sm:$0xff] %v1418
  %1505 = vst [vmem:[%s3 + $0x130] sm:$0xff] %v1422
  %1506 = vst [vmem:[%s3 + $0x140] sm:$0xff] %v1428
  %1507 = vst [vmem:[%s3 + $0x150] sm:$0xff] %v1432
  %1508 = vst [vmem:[%s3 + $0x160] sm:$0xff] %v1438
  %1509 = vst [vmem:[%s3 + $0x170] sm:$0xff] %v1442
  %1510 = vst [vmem:[%s3 + $0x180] sm:$0xff] %v1448
  %1511 = vst [vmem:[%s3 + $0x190] sm:$0xff] %v1452
  %1512 = vst [vmem:[%s3 + $0x1a0] sm:$0xff] %v1458
  %1513 = vst [vmem:[%s3 + $0x1b0] sm:$0xff] %v1462
  %1514 = vst [vmem:[%s3 + $0x1c0] sm:$0xff] %v1468
  %1515 = vst [vmem:[%s3 + $0x1d0] sm:$0xff] %v1472
  %1516 = vst [vmem:[%s3 + $0x1e0] sm:$0xff] %v1478
  %1517 = vst [vmem:[%s3 + $0x1f0] sm:$0xff] %v1482
  %s1518 = scalar_lea.vmem %s3, 8
  %1519 = vst [vmem:[%s1518] sm:$0xff] %v1330
  %1520 = vst [vmem:[%s1518 + $0x10] sm:$0xff] %v1334
  %1521 = vst [vmem:[%s1518 + $0x20] sm:$0xff] %v1340
  %1522 = vst [vmem:[%s1518 + $0x30] sm:$0xff] %v1344
  %1523 = vst [vmem:[%s1518 + $0x40] sm:$0xff] %v1350
  %1524 = vst [vmem:[%s1518 + $0x50] sm:$0xff] %v1354
  %1525 = vst [vmem:[%s1518 + $0x60] sm:$0xff] %v1360
  %1526 = vst [vmem:[%s1518 + $0x70] sm:$0xff] %v1364
  %1527 = vst [vmem:[%s1518 + $0x80] sm:$0xff] %v1370
  %1528 = vst [vmem:[%s1518 + $0x90] sm:$0xff] %v1374
  %1529 = vst [vmem:[%s1518 + $0xa0] sm:$0xff] %v1380
  %1530 = vst [vmem:[%s1518 + $0xb0] sm:$0xff] %v1384
  %1531 = vst [vmem:[%s1518 + $0xc0] sm:$0xff] %v1390
  %1532 = vst [vmem:[%s1518 + $0xd0] sm:$0xff] %v1394
  %1533 = vst [vmem:[%s1518 + $0xe0] sm:$0xff] %v1400
  %1534 = vst [vmem:[%s1518 + $0xf0] sm:$0xff] %v1404
  %1535 = vst [vmem:[%s1518 + $0x100] sm:$0xff] %v1410
  %1536 = vst [vmem:[%s1518 + $0x110] sm:$0xff] %v1414
  %1537 = vst [vmem:[%s1518 + $0x120] sm:$0xff] %v1420
  %1538 = vst [vmem:[%s1518 + $0x130] sm:$0xff] %v1424
  %1539 = vst [vmem:[%s1518 + $0x140] sm:$0xff] %v1430
  %1540 = vst [vmem:[%s1518 + $0x150] sm:$0xff] %v1434
  %1541 = vst [vmem:[%s1518 + $0x160] sm:$0xff] %v1440
  %1542 = vst [vmem:[%s1518 + $0x170] sm:$0xff] %v1444
  %1543 = vst [vmem:[%s1518 + $0x180] sm:$0xff] %v1450
  %1544 = vst [vmem:[%s1518 + $0x190] sm:$0xff] %v1454
  %1545 = vst [vmem:[%s1518 + $0x1a0] sm:$0xff] %v1460
  %1546 = vst [vmem:[%s1518 + $0x1b0] sm:$0xff] %v1464
  %1547 = vst [vmem:[%s1518 + $0x1c0] sm:$0xff] %v1470
  %1548 = vst [vmem:[%s1518 + $0x1d0] sm:$0xff] %v1474
  %1549 = vst [vmem:[%s1518 + $0x1e0] sm:$0xff] %v1480
  %1550 = vst [vmem:[%s1518 + $0x1f0] sm:$0xff] %v1484
  // Predicated region
  $region14: #{patch_expanding_forward.1} parent=0 // pred_check
    _
  $region15: #{patch_expanding_forward.1} parent=0 // pred_check_branch
    %1552 = sbr.rel (0) target = $region17
  $region16: #{patch_expanding_forward.1} parent=0 // pred_region
    _
  $region17: #{patch_expanding_forward.1} parent=0 // pred_fallthru
    _
  // Predicated region
  $region18: #{patch_expanding_forward.1} parent=0 // pred_check
    _
  $region19: #{patch_expanding_forward.1} parent=0 // pred_check_branch
    %1554 = sbr.rel (0) target = $region21
  $region20: #{patch_expanding_forward.1} parent=0 // pred_region
    _
  $region21: #{patch_expanding_forward.1} parent=0 // pred_fallthru
    _

</llo_original>
